<compile_context>
chip_gen: v7x
topology: tpu7x:2x2x1
jax: 0.10.0
libtpu: 0.0.40
codegen_flags: <defaults>
</compile_context>

<pallas_src>
import jax
import jax.numpy as jnp
from jax import lax
from jax.experimental import pallas as pl
from jax.experimental.pallas import tpu as pltpu

K = 5                 # kernel size (k = (5, 5) default in the module)
PAD = (K - 1) // 2    # = 2, "same" padding


@jax.jit
def gcn_forward(x_nchw, tp):
    """x_nchw: (N, C, H, W) f32. tp: PyTorch-layout params (OIHW weights, (OC,) biases).
    Returns (N, OC, H, W) f32."""
    N, C, H, W = x_nchw.shape
    OC = tp["wl1"].shape[0]
    Hp, Wp = H + 2 * PAD, W + 2 * PAD
    HWp, HpWp = H * Wp, Hp * Wp
    XF = HpWp + 2 * PAD          # flat input length (+PAD halo at each end for tap slices)

    # ---- parameter prep (tiny wrapper-side layout plumbing) ---------------------------
    # Weights reshaped to (OC, K*Cin) with contraction index t*Cin + cin.
    wl1 = jnp.transpose(tp["wl1"][:, :, :, 0], (0, 2, 1)).reshape(OC, K * C)
    wl2 = jnp.transpose(tp["wl2"][:, :, 0, :], (0, 2, 1)).reshape(OC, K * OC)
    wr1 = jnp.transpose(tp["wr1"][:, :, 0, :], (0, 2, 1)).reshape(OC, K * C)
    wr2 = jnp.transpose(tp["wr2"][:, :, :, 0], (0, 2, 1)).reshape(OC, K * OC)
    # First-conv biases as masked planes: zero on the padding ring so the intermediates
    # keep exact zero padding for the second convs of each branch.
    wmask = jnp.zeros((H, Wp), jnp.float32).at[:, PAD:PAD + W].set(1.0).reshape(1, HWp)
    hmask = jnp.zeros((Hp, Wp), jnp.float32).at[PAD:PAD + H, :].set(1.0).reshape(1, HpWp)
    bl1p = tp["bl1"][:, None] * wmask            # (OC, HWp)   branch-L conv1 bias plane
    br1p = tp["br1"][:, None] * hmask            # (OC, HpWp)  branch-R conv1 bias plane
    b2 = (tp["bl2"] + tp["br2"])[:, None]        # (OC, 1)     folded second-conv biases

    # ---- input: pad spatially, flatten (Hp,Wp), add PAD flat halo at both ends --------
    xp = jnp.pad(x_nchw, ((0, 0), (0, 0), (PAD, PAD), (PAD, PAD)))       # (N, C, Hp, Wp)
    xf = jnp.pad(xp.reshape(N, C, HpWp), ((0, 0), (0, 0), (PAD, PAD)))   # (N, C, XF)

    def kernel(x_ref, wl1_ref, wl2_ref, wr1_ref, wr2_ref,
               bl1_ref, br1_ref, b2_ref, o_ref, tmp_ref):
        # x_ref  : (1, C, XF)    flat zero-padded input, index = PAD + h'*Wp + w'
        # o_ref  : (1, OC, HWp)  output on (h, w') coords (pad cols cropped by wrapper)
        # tmp_ref: (OC, HpWp)    VMEM scratch reused by both branch intermediates

        def taps(slice_fn, offsets):
            # Stack K shifted spatial views along the contraction (sublane) axis.
            return jnp.concatenate([slice_fn(o) for o in offsets], axis=0)

        # ------- branch L: conv (K,1) over H — fused taps, one matmul ------------------
        b = taps(lambda o: x_ref[0, :, o:o + HWp], [PAD + t * Wp for t in range(K)])
        y = jnp.dot(wl1_ref[...], b, preferred_element_type=jnp.float32) + bl1_ref[...]
        # Stash with a PAD-element flat halo on each side so conv_l2 tap slices stay
        # in-bounds (halo values only feed cropped pad-column outputs).
        tmp_ref[:, :PAD] = jnp.zeros((OC, PAD), jnp.float32)
        tmp_ref[:, PAD:PAD + HWp] = y
        tmp_ref[:, PAD + HWp:2 * PAD + HWp] = jnp.zeros((OC, PAD), jnp.float32)

        # ------- branch L: conv (1,K) over W -------------------------------------------
        b = taps(lambda o: tmp_ref[:, o:o + HWp], list(range(K)))
        acc = jnp.dot(wl2_ref[...], b, preferred_element_type=jnp.float32)

        # ------- branch R: conv (1,K) over W -------------------------------------------
        b = taps(lambda o: x_ref[0, :, o:o + HpWp], list(range(K)))
        y = jnp.dot(wr1_ref[...], b, preferred_element_type=jnp.float32) + br1_ref[...]
        tmp_ref[...] = y

        # ------- branch R: conv (K,1) over H -------------------------------------------
        b = taps(lambda o: tmp_ref[:, o:o + HWp], [t * Wp for t in range(K)])
        acc = acc + jnp.dot(wr2_ref[...], b, preferred_element_type=jnp.float32)

        # ------- folded second-conv bias + LeakyReLU(0.1), lane-dense store ------------
        acc = acc + b2_ref[...]
        o_ref[0] = jnp.where(acc >= 0.0, acc, 0.1 * acc)

    out = pl.pallas_call(
        kernel,
        out_shape=jax.ShapeDtypeStruct((N, OC, HWp), jnp.float32),
        grid_spec=pltpu.PrefetchScalarGridSpec(
            num_scalar_prefetch=0,
            grid=(N,),
            in_specs=[
                pl.BlockSpec((1, C, XF), lambda n: (n, 0, 0)),      # flat padded input
                pl.BlockSpec((OC, K * C), lambda n: (0, 0)),        # wl1
                pl.BlockSpec((OC, K * OC), lambda n: (0, 0)),       # wl2
                pl.BlockSpec((OC, K * C), lambda n: (0, 0)),        # wr1
                pl.BlockSpec((OC, K * OC), lambda n: (0, 0)),       # wr2
                pl.BlockSpec((OC, HWp), lambda n: (0, 0)),          # bl1 plane (W-masked)
                pl.BlockSpec((OC, HpWp), lambda n: (0, 0)),         # br1 plane (H-masked)
                pl.BlockSpec((OC, 1), lambda n: (0, 0)),            # bl2 + br2
            ],
            out_specs=pl.BlockSpec((1, OC, HWp), lambda n: (n, 0, 0)),
            scratch_shapes=[pltpu.VMEM((OC, HpWp), jnp.float32)],
        ),
        compiler_params=pltpu.CompilerParams(
            dimension_semantics=("parallel",),
            vmem_limit_bytes=32 * 1024 * 1024,
        ),
    )(xf, wl1, wl2, wr1, wr2, bl1p, br1p, b2)

    # Crop the W-padding columns and restore (N, OC, H, W).
    return out.reshape(N, OC, H, Wp)[:, :, :, PAD:PAD + W]


# ------------------------------ pure-JAX reference (NCHW) --------------------------------
def _conv2d_nchw(x, w_oihw, b, pad_h, pad_w):
    y = lax.conv_general_dilated(
        x, w_oihw, window_strides=(1, 1),
        padding=((pad_h, pad_h), (pad_w, pad_w)),
        dimension_numbers=("NCHW", "OIHW", "NCHW"))
    return y + b[None, :, None, None]


def gcn_reference(x, tp):
    xl = _conv2d_nchw(x, tp["wl1"], tp["bl1"], PAD, 0)
    xl = _conv2d_nchw(xl, tp["wl2"], tp["bl2"], 0, PAD)
    xr = _conv2d_nchw(x, tp["wr1"], tp["br1"], 0, PAD)
    xr = _conv2d_nchw(xr, tp["wr2"], tp["br2"], PAD, 0)
    v = xl + xr
    return jnp.where(v >= 0, v, 0.1 * v)


if __name__ == "__main__":
    N, C, OC, H, W = 2, 4, 8, 16, 16
    key = jax.random.PRNGKey(0)
    ks = jax.random.split(key, 9)

    x = jax.random.normal(ks[0], (N, C, H, W), jnp.float32)

    # Deterministic synthetic weights in PyTorch OIHW layout (shapes per nn.Conv2d defs).
    s = 0.1
    torch_params = {
        "wl1": s * jax.random.normal(ks[1], (OC, C, K, 1), jnp.float32),
        "bl1": s * jax.random.normal(ks[2], (OC,), jnp.float32),
        "wl2": s * jax.random.normal(ks[3], (OC, OC, 1, K), jnp.float32),
        "bl2": s * jax.random.normal(ks[4], (OC,), jnp.float32),
        "wr1": s * jax.random.normal(ks[5], (OC, C, 1, K), jnp.float32),
        "br1": s * jax.random.normal(ks[6], (OC,), jnp.float32),
        "wr2": s * jax.random.normal(ks[7], (OC, OC, K, 1), jnp.float32),
        "br2": s * jax.random.normal(ks[8], (OC,), jnp.float32),
    }

    out = jax.block_until_ready(gcn_forward(x, torch_params))
    ref = jax.block_until_ready(gcn_reference(x, torch_params))

    assert out.shape == (N, OC, H, W), out.shape
    err = float(jnp.max(jnp.abs(out - ref)))
    assert jnp.allclose(out, ref, atol=2e-3, rtol=2e-3), err
    print("KERNEL_OK")
</pallas_src>

<mosaic_0001>
module attributes {stable_mosaic.version = 11 : i64} {
  func.func @kernel(%arg0: i32, %arg1: memref<1x4x404xf32, #tpu.memory_space<vmem>>, %arg2: memref<8x20xf32, #tpu.memory_space<vmem>>, %arg3: memref<8x40xf32, #tpu.memory_space<vmem>>, %arg4: memref<8x20xf32, #tpu.memory_space<vmem>>, %arg5: memref<8x40xf32, #tpu.memory_space<vmem>>, %arg6: memref<8x320xf32, #tpu.memory_space<vmem>>, %arg7: memref<8x400xf32, #tpu.memory_space<vmem>>, %arg8: memref<8x1xf32, #tpu.memory_space<vmem>>, %arg9: memref<1x8x320xf32, #tpu.memory_space<vmem>>, %arg10: memref<8x400xf32, #tpu.memory_space<vmem>>) attributes {dimension_semantics = [#tpu.dimension_semantics<parallel>], iteration_bounds = array<i64: 2>, scalar_prefetch = 0 : i64, scratch_operands = 1 : i64, tpu.core_type = #tpu.core_type<tc>, window_params = [{transform_indices = @transform_0, window_bounds = array<i64: 1, 4, 404>}, {pipeline_mode = #tpu.pipeline_mode<synchronous>, transform_indices = @transform_1, window_bounds = array<i64: 8, 20>}, {pipeline_mode = #tpu.pipeline_mode<synchronous>, transform_indices = @transform_2, window_bounds = array<i64: 8, 40>}, {pipeline_mode = #tpu.pipeline_mode<synchronous>, transform_indices = @transform_3, window_bounds = array<i64: 8, 20>}, {pipeline_mode = #tpu.pipeline_mode<synchronous>, transform_indices = @transform_4, window_bounds = array<i64: 8, 40>}, {pipeline_mode = #tpu.pipeline_mode<synchronous>, transform_indices = @transform_5, window_bounds = array<i64: 8, 320>}, {pipeline_mode = #tpu.pipeline_mode<synchronous>, transform_indices = @transform_6, window_bounds = array<i64: 8, 400>}, {pipeline_mode = #tpu.pipeline_mode<synchronous>, transform_indices = @transform_7, window_bounds = array<i64: 8, 1>}, {transform_indices = @transform_8, window_bounds = array<i64: 1, 8, 320>}]} {
    %c0 = arith.constant 0 : index
    %c0_0 = arith.constant 0 : index
    %c2 = arith.constant 2 : index
    %0 = vector.load %arg1[%c0, %c0_0, %c2] : memref<1x4x404xf32, #tpu.memory_space<vmem>>, vector<1x4x320xf32>
    %1 = vector.shape_cast %0 : vector<1x4x320xf32> to vector<4x320xf32>
    %c0_1 = arith.constant 0 : index
    %c0_2 = arith.constant 0 : index
    %c22 = arith.constant 22 : index
    %2 = vector.load %arg1[%c0_1, %c0_2, %c22] : memref<1x4x404xf32, #tpu.memory_space<vmem>>, vector<1x4x320xf32>
    %3 = vector.shape_cast %2 : vector<1x4x320xf32> to vector<4x320xf32>
    %c0_3 = arith.constant 0 : index
    %c0_4 = arith.constant 0 : index
    %c42 = arith.constant 42 : index
    %4 = vector.load %arg1[%c0_3, %c0_4, %c42] : memref<1x4x404xf32, #tpu.memory_space<vmem>>, vector<1x4x320xf32>
    %5 = vector.shape_cast %4 : vector<1x4x320xf32> to vector<4x320xf32>
    %c0_5 = arith.constant 0 : index
    %c0_6 = arith.constant 0 : index
    %c62 = arith.constant 62 : index
    %6 = vector.load %arg1[%c0_5, %c0_6, %c62] : memref<1x4x404xf32, #tpu.memory_space<vmem>>, vector<1x4x320xf32>
    %7 = vector.shape_cast %6 : vector<1x4x320xf32> to vector<4x320xf32>
    %c0_7 = arith.constant 0 : index
    %c0_8 = arith.constant 0 : index
    %c82 = arith.constant 82 : index
    %8 = vector.load %arg1[%c0_7, %c0_8, %c82] : memref<1x4x404xf32, #tpu.memory_space<vmem>>, vector<1x4x320xf32>
    %9 = vector.shape_cast %8 : vector<1x4x320xf32> to vector<4x320xf32>
    %10 = tpu.concatenate %1, %3, %5, %7, %9 in 0 : vector<4x320xf32>, vector<4x320xf32>, vector<4x320xf32>, vector<4x320xf32>, vector<4x320xf32> -> vector<20x320xf32>
    %c0_9 = arith.constant 0 : index
    %c0_10 = arith.constant 0 : index
    %11 = vector.load %arg2[%c0_9, %c0_10] : memref<8x20xf32, #tpu.memory_space<vmem>>, vector<8x20xf32>
    %cst = arith.constant dense<0.000000e+00> : vector<8x320xf32>
    %12 = tpu.matmul %11, %10, %cst {dimension_numbers = #tpu.dot_dimension_numbers<[1], [0], [0], [1], [0, 0, 1, 1], [], []>} : vector<8x20xf32>, vector<20x320xf32>, vector<8x320xf32> -> vector<8x320xf32>
    %c0_11 = arith.constant 0 : index
    %c0_12 = arith.constant 0 : index
    %13 = vector.load %arg6[%c0_11, %c0_12] : memref<8x320xf32, #tpu.memory_space<vmem>>, vector<8x320xf32>
    %14 = arith.addf %12, %13 : vector<8x320xf32>
    %cst_13 = arith.constant 0.000000e+00 : f32
    %15 = vector.broadcast %cst_13 : f32 to vector<8x2xf32>
    %c0_14 = arith.constant 0 : index
    %c0_15 = arith.constant 0 : index
    %16 = vector.load %arg10[%c0_14, %c0_15] : memref<8x400xf32, #tpu.memory_space<vmem>>, vector<8x2xf32>
    tpu.vector_store %arg10[%c0_14, %c0_15], %15 {strides = array<i32>} : memref<8x400xf32, #tpu.memory_space<vmem>>, vector<8x2xf32>,
    %c0_16 = arith.constant 0 : index
    %c2_17 = arith.constant 2 : index
    %17 = vector.load %arg10[%c0_16, %c2_17] : memref<8x400xf32, #tpu.memory_space<vmem>>, vector<8x320xf32>
    tpu.vector_store %arg10[%c0_16, %c2_17], %14 {strides = array<i32>} : memref<8x400xf32, #tpu.memory_space<vmem>>, vector<8x320xf32>,
    %cst_18 = arith.constant 0.000000e+00 : f32
    %18 = vector.broadcast %cst_18 : f32 to vector<8x2xf32>
    %c0_19 = arith.constant 0 : index
    %c322 = arith.constant 322 : index
    %19 = vector.load %arg10[%c0_19, %c322] : memref<8x400xf32, #tpu.memory_space<vmem>>, vector<8x2xf32>
    tpu.vector_store %arg10[%c0_19, %c322], %18 {strides = array<i32>} : memref<8x400xf32, #tpu.memory_space<vmem>>, vector<8x2xf32>,
    %c0_20 = arith.constant 0 : index
    %c0_21 = arith.constant 0 : index
    %20 = vector.load %arg10[%c0_20, %c0_21] : memref<8x400xf32, #tpu.memory_space<vmem>>, vector<8x320xf32>
    %c0_22 = arith.constant 0 : index
    %c1 = arith.constant 1 : index
    %21 = vector.load %arg10[%c0_22, %c1] : memref<8x400xf32, #tpu.memory_space<vmem>>, vector<8x320xf32>
    %c0_23 = arith.constant 0 : index
    %c2_24 = arith.constant 2 : index
    %22 = vector.load %arg10[%c0_23, %c2_24] : memref<8x400xf32, #tpu.memory_space<vmem>>, vector<8x320xf32>
    %c0_25 = arith.constant 0 : index
    %c3 = arith.constant 3 : index
    %23 = vector.load %arg10[%c0_25, %c3] : memref<8x400xf32, #tpu.memory_space<vmem>>, vector<8x320xf32>
    %c0_26 = arith.constant 0 : index
    %c4 = arith.constant 4 : index
    %24 = vector.load %arg10[%c0_26, %c4] : memref<8x400xf32, #tpu.memory_space<vmem>>, vector<8x320xf32>
    %25 = tpu.concatenate %20, %21, %22, %23, %24 in 0 : vector<8x320xf32>, vector<8x320xf32>, vector<8x320xf32>, vector<8x320xf32>, vector<8x320xf32> -> vector<40x320xf32>
    %c0_27 = arith.constant 0 : index
    %c0_28 = arith.constant 0 : index
    %26 = vector.load %arg3[%c0_27, %c0_28] : memref<8x40xf32, #tpu.memory_space<vmem>>, vector<8x40xf32>
    %cst_29 = arith.constant dense<0.000000e+00> : vector<8x320xf32>
    %27 = tpu.matmul %26, %25, %cst_29 {dimension_numbers = #tpu.dot_dimension_numbers<[1], [0], [0], [1], [0, 0, 1, 1], [], []>} : vector<8x40xf32>, vector<40x320xf32>, vector<8x320xf32> -> vector<8x320xf32>
    %c0_30 = arith.constant 0 : index
    %c0_31 = arith.constant 0 : index
    %c0_32 = arith.constant 0 : index
    %28 = vector.load %arg1[%c0_30, %c0_31, %c0_32] : memref<1x4x404xf32, #tpu.memory_space<vmem>>, vector<1x4x400xf32>
    %29 = vector.shape_cast %28 : vector<1x4x400xf32> to vector<4x400xf32>
    %c0_33 = arith.constant 0 : index
    %c0_34 = arith.constant 0 : index
    %c1_35 = arith.constant 1 : index
    %30 = vector.load %arg1[%c0_33, %c0_34, %c1_35] : memref<1x4x404xf32, #tpu.memory_space<vmem>>, vector<1x4x400xf32>
    %31 = vector.shape_cast %30 : vector<1x4x400xf32> to vector<4x400xf32>
    %c0_36 = arith.constant 0 : index
    %c0_37 = arith.constant 0 : index
    %c2_38 = arith.constant 2 : index
    %32 = vector.load %arg1[%c0_36, %c0_37, %c2_38] : memref<1x4x404xf32, #tpu.memory_space<vmem>>, vector<1x4x400xf32>
    %33 = vector.shape_cast %32 : vector<1x4x400xf32> to vector<4x400xf32>
    %c0_39 = arith.constant 0 : index
    %c0_40 = arith.constant 0 : index
    %c3_41 = arith.constant 3 : index
    %34 = vector.load %arg1[%c0_39, %c0_40, %c3_41] : memref<1x4x404xf32, #tpu.memory_space<vmem>>, vector<1x4x400xf32>
    %35 = vector.shape_cast %34 : vector<1x4x400xf32> to vector<4x400xf32>
    %c0_42 = arith.constant 0 : index
    %c0_43 = arith.constant 0 : index
    %c4_44 = arith.constant 4 : index
    %36 = vector.load %arg1[%c0_42, %c0_43, %c4_44] : memref<1x4x404xf32, #tpu.memory_space<vmem>>, vector<1x4x400xf32>
    %37 = vector.shape_cast %36 : vector<1x4x400xf32> to vector<4x400xf32>
    %38 = tpu.concatenate %29, %31, %33, %35, %37 in 0 : vector<4x400xf32>, vector<4x400xf32>, vector<4x400xf32>, vector<4x400xf32>, vector<4x400xf32> -> vector<20x400xf32>
    %c0_45 = arith.constant 0 : index
    %c0_46 = arith.constant 0 : index
    %39 = vector.load %arg4[%c0_45, %c0_46] : memref<8x20xf32, #tpu.memory_space<vmem>>, vector<8x20xf32>
    %cst_47 = arith.constant dense<0.000000e+00> : vector<8x400xf32>
    %40 = tpu.matmul %39, %38, %cst_47 {dimension_numbers = #tpu.dot_dimension_numbers<[1], [0], [0], [1], [0, 0, 1, 1], [], []>} : vector<8x20xf32>, vector<20x400xf32>, vector<8x400xf32> -> vector<8x400xf32>
    %c0_48 = arith.constant 0 : index
    %c0_49 = arith.constant 0 : index
    %41 = vector.load %arg7[%c0_48, %c0_49] : memref<8x400xf32, #tpu.memory_space<vmem>>, vector<8x400xf32>
    %42 = arith.addf %40, %41 : vector<8x400xf32>
    %c0_50 = arith.constant 0 : index
    %c0_51 = arith.constant 0 : index
    %43 = vector.load %arg10[%c0_50, %c0_51] : memref<8x400xf32, #tpu.memory_space<vmem>>, vector<8x400xf32>
    tpu.vector_store %arg10[%c0_50, %c0_51], %42 {strides = array<i32>} : memref<8x400xf32, #tpu.memory_space<vmem>>, vector<8x400xf32>,
    %c0_52 = arith.constant 0 : index
    %c0_53 = arith.constant 0 : index
    %44 = vector.load %arg10[%c0_52, %c0_53] : memref<8x400xf32, #tpu.memory_space<vmem>>, vector<8x320xf32>
    %c0_54 = arith.constant 0 : index
    %c20 = arith.constant 20 : index
    %45 = vector.load %arg10[%c0_54, %c20] : memref<8x400xf32, #tpu.memory_space<vmem>>, vector<8x320xf32>
    %c0_55 = arith.constant 0 : index
    %c40 = arith.constant 40 : index
    %46 = vector.load %arg10[%c0_55, %c40] : memref<8x400xf32, #tpu.memory_space<vmem>>, vector<8x320xf32>
    %c0_56 = arith.constant 0 : index
    %c60 = arith.constant 60 : index
    %47 = vector.load %arg10[%c0_56, %c60] : memref<8x400xf32, #tpu.memory_space<vmem>>, vector<8x320xf32>
    %c0_57 = arith.constant 0 : index
    %c80 = arith.constant 80 : index
    %48 = vector.load %arg10[%c0_57, %c80] : memref<8x400xf32, #tpu.memory_space<vmem>>, vector<8x320xf32>
    %49 = tpu.concatenate %44, %45, %46, %47, %48 in 0 : vector<8x320xf32>, vector<8x320xf32>, vector<8x320xf32>, vector<8x320xf32>, vector<8x320xf32> -> vector<40x320xf32>
    %c0_58 = arith.constant 0 : index
    %c0_59 = arith.constant 0 : index
    %50 = vector.load %arg5[%c0_58, %c0_59] : memref<8x40xf32, #tpu.memory_space<vmem>>, vector<8x40xf32>
    %cst_60 = arith.constant dense<0.000000e+00> : vector<8x320xf32>
    %51 = tpu.matmul %50, %49, %cst_60 {dimension_numbers = #tpu.dot_dimension_numbers<[1], [0], [0], [1], [0, 0, 1, 1], [], []>} : vector<8x40xf32>, vector<40x320xf32>, vector<8x320xf32> -> vector<8x320xf32>
    %52 = arith.addf %27, %51 : vector<8x320xf32>
    %c0_61 = arith.constant 0 : index
    %c0_62 = arith.constant 0 : index
    %53 = vector.load %arg8[%c0_61, %c0_62] : memref<8x1xf32, #tpu.memory_space<vmem>>, vector<8x1xf32>
    %54 = vector.broadcast %53 : vector<8x1xf32> to vector<8x320xf32>
    %55 = arith.addf %52, %54 : vector<8x320xf32>
    %cst_63 = arith.constant 0.000000e+00 : f32
    %56 = vector.broadcast %cst_63 : f32 to vector<8x320xf32>
    %57 = arith.cmpf oge, %55, %56 : vector<8x320xf32>
    %cst_64 = arith.constant 1.000000e-01 : f32
    %58 = vector.broadcast %cst_64 : f32 to vector<8x320xf32>
    %59 = arith.mulf %58, %55 : vector<8x320xf32>
    %60 = arith.select %57, %55, %59 : vector<8x320xi1>, vector<8x320xf32>
    %c0_65 = arith.constant 0 : index
    %c0_66 = arith.constant 0 : index
    %c0_67 = arith.constant 0 : index
    %61 = vector.load %arg9[%c0_65, %c0_66, %c0_67] : memref<1x8x320xf32, #tpu.memory_space<vmem>>, vector<1x8x320xf32>
    %62 = vector.shape_cast %61 : vector<1x8x320xf32> to vector<8x320xf32>
    %63 = vector.shape_cast %60 : vector<8x320xf32> to vector<1x8x320xf32>
    tpu.vector_store %arg9[%c0_65, %c0_66, %c0_67], %63 {strides = array<i32>} : memref<1x8x320xf32, #tpu.memory_space<vmem>>, vector<1x8x320xf32>,
    return
  }
  func.func @transform_0(%arg0: i32) -> (i32, i32, i32) {
    %c0_i32 = arith.constant 0 : i32
    %c0_i32_0 = arith.constant 0 : i32
    %c0_i32_1 = arith.constant 0 : i32
    return %arg0, %c0_i32, %c0_i32_0 : i32, i32, i32
  }
  func.func @transform_1(%arg0: i32) -> (i32, i32) {
    %c0_i32 = arith.constant 0 : i32
    %c0_i32_0 = arith.constant 0 : i32
    %c0_i32_1 = arith.constant 0 : i32
    return %c0_i32, %c0_i32_0 : i32, i32
  }
  func.func @transform_2(%arg0: i32) -> (i32, i32) {
    %c0_i32 = arith.constant 0 : i32
    %c0_i32_0 = arith.constant 0 : i32
    %c0_i32_1 = arith.constant 0 : i32
    return %c0_i32, %c0_i32_0 : i32, i32
  }
  func.func @transform_3(%arg0: i32) -> (i32, i32) {
    %c0_i32 = arith.constant 0 : i32
    %c0_i32_0 = arith.constant 0 : i32
    %c0_i32_1 = arith.constant 0 : i32
    return %c0_i32, %c0_i32_0 : i32, i32
  }
  func.func @transform_4(%arg0: i32) -> (i32, i32) {
    %c0_i32 = arith.constant 0 : i32
    %c0_i32_0 = arith.constant 0 : i32
    %c0_i32_1 = arith.constant 0 : i32
    return %c0_i32, %c0_i32_0 : i32, i32
  }
  func.func @transform_5(%arg0: i32) -> (i32, i32) {
    %c0_i32 = arith.constant 0 : i32
    %c0_i32_0 = arith.constant 0 : i32
    %c0_i32_1 = arith.constant 0 : i32
    return %c0_i32, %c0_i32_0 : i32, i32
  }
  func.func @transform_6(%arg0: i32) -> (i32, i32) {
    %c0_i32 = arith.constant 0 : i32
    %c0_i32_0 = arith.constant 0 : i32
    %c0_i32_1 = arith.constant 0 : i32
    return %c0_i32, %c0_i32_0 : i32, i32
  }
  func.func @transform_7(%arg0: i32) -> (i32, i32) {
    %c0_i32 = arith.constant 0 : i32
    %c0_i32_0 = arith.constant 0 : i32
    %c0_i32_1 = arith.constant 0 : i32
    return %c0_i32, %c0_i32_0 : i32, i32
  }
  func.func @transform_8(%arg0: i32) -> (i32, i32, i32) {
    %c0_i32 = arith.constant 0 : i32
    %c0_i32_0 = arith.constant 0 : i32
    %c0_i32_1 = arith.constant 0 : i32
    return %arg0, %c0_i32, %c0_i32_0 : i32, i32, i32
  }
}

</mosaic_0001>

<llo_original>
// kernel: mul.18
$region0: #{mul.18}
  %s0 = inlined_call_operand.vmem [shape: f32[16,20], index: 0, kind: input, shape index: {}]
  %s1 = inlined_call_operand.vmem [shape: f32[320], index: 1, kind: output, shape index: {}]
  $region1: #{mul.18} parent=0
    #allocation0 [shape = 'u8[4096]{0}', space=vmem, size = 0x1000, scoped, tag = 'scoped mem for output reshape']
    %v2 = vld [vmem:[%s0] sm:$0x1]
    %vm3 = vcmask 162816
    %4 = vst.msk [vmem:[#allocation0] sm:$0x1] %vm3, %v2
    %s5 = scalar_lea.vmem %s0, 6
    %v6 = vld [vmem:[%s5] sm:$0x1]
    %s7 = scalar_lea.vmem %s0, 6
    %v8 = vld [vmem:[%s7] sm:$0x1]
    %vm9 = vcmask 64512
    %v10 = vsel %vm9, %v8, %v6
    %11 = vrot.lane.b32.xlu0 %v10, 120
    %v12 = vpop.permute.xlu0 %11
    %vm13 = vcmask 97280
    %s14 = scalar_lea.vmem [#allocation0], 1
    %15 = vst.msk [vmem:[%s14] sm:$0x1] %vm13, %v12
    %vm16 = vcmask 1048512
    %17 = vst.msk [vmem:[#allocation0] sm:$0x1] %vm16, %v12
    %s18 = scalar_lea.vmem %s0, 12
    %v19 = vld [vmem:[%s18] sm:$0x1]
    %s20 = scalar_lea.vmem %s0, 12
    %v21 = vld [vmem:[%s20] sm:$0x1]
    %vm22 = vcmask 130048
    %v23 = vsel %vm22, %v21, %v19
    %24 = vrot.lane.b32.xlu0 %v23, 112
    %v25 = vpop.permute.xlu0 %24
    %vm26 = vcmask 31744
    %s27 = scalar_lea.vmem [#allocation0], 2
    %28 = vst.msk [vmem:[%s27] sm:$0x1] %vm26, %v25
    %vm29 = vcmask 1048448
    %s30 = scalar_lea.vmem [#allocation0], 1
    %31 = vst.msk [vmem:[%s30] sm:$0x1] %vm29, %v25
    %s32 = scalar_lea.vmem %s0, 5
    %v33 = vld [vmem:[%s32] sm:$0x1]
    %34 = vrot.lane.b32.xlu0 %v33, 100
    %v35 = vpop.permute.xlu0 %34
    %vm36 = vcmask 982816
    %37 = vst.msk [vmem:[#allocation0] sm:$0x1] %vm36, %v35
    %s38 = scalar_lea.vmem %s0, 11
    %v39 = vld [vmem:[%s38] sm:$0x1]
    %40 = vrot.lane.b32.xlu0 %v39, 92
    %v41 = vpop.permute.xlu0 %40
    %vm42 = vcmask 917216
    %s43 = scalar_lea.vmem [#allocation0], 1
    %44 = vst.msk [vmem:[%s43] sm:$0x1] %vm42, %v41
    %s45 = scalar_lea.vmem %s0, 4
    %v46 = vld [vmem:[%s45] sm:$0x1]
    %47 = vrot.lane.b32.xlu0 %v46, 80
    %v48 = vpop.permute.xlu0 %47
    %vm49 = vcmask 818816
    %50 = vst.msk [vmem:[#allocation0] sm:$0x1] %vm49, %v48
    %s51 = scalar_lea.vmem %s0, 10
    %v52 = vld [vmem:[%s51] sm:$0x1]
    %53 = vrot.lane.b32.xlu0 %v52, 72
    %v54 = vpop.permute.xlu0 %53
    %vm55 = vcmask 753216
    %s56 = scalar_lea.vmem [#allocation0], 1
    %57 = vst.msk [vmem:[%s56] sm:$0x1] %vm55, %v54
    %s58 = scalar_lea.vmem %s0, 3
    %v59 = vld [vmem:[%s58] sm:$0x1]
    %60 = vrot.lane.b32.xlu0 %v59, 60
    %v61 = vpop.permute.xlu0 %60
    %vm62 = vcmask 654816
    %63 = vst.msk [vmem:[#allocation0] sm:$0x1] %vm62, %v61
    %s64 = scalar_lea.vmem %s0, 9
    %v65 = vld [vmem:[%s64] sm:$0x1]
    %66 = vrot.lane.b32.xlu0 %v65, 52
    %v67 = vpop.permute.xlu0 %66
    %vm68 = vcmask 589216
    %s69 = scalar_lea.vmem [#allocation0], 1
    %70 = vst.msk [vmem:[%s69] sm:$0x1] %vm68, %v67
    %s71 = scalar_lea.vmem %s0, 15
    %v72 = vld [vmem:[%s71] sm:$0x1]
    %73 = vrot.lane.b32.xlu0 %v72, 44
    %v74 = vpop.permute.xlu0 %73
    %vm75 = vcmask 523616
    %s76 = scalar_lea.vmem [#allocation0], 2
    %77 = vst.msk [vmem:[%s76] sm:$0x1] %vm75, %v74
    %s78 = scalar_lea.vmem %s0, 2
    %v79 = vld [vmem:[%s78] sm:$0x1]
    %80 = vrot.lane.b32.xlu0 %v79, 40
    %v81 = vpop.permute.xlu0 %80
    %vm82 = vcmask 490816
    %83 = vst.msk [vmem:[#allocation0] sm:$0x1] %vm82, %v81
    %s84 = scalar_lea.vmem %s0, 8
    %v85 = vld [vmem:[%s84] sm:$0x1]
    %86 = vrot.lane.b32.xlu0 %v85, 32
    %v87 = vpop.permute.xlu0 %86
    %vm88 = vcmask 425216
    %s89 = scalar_lea.vmem [#allocation0], 1
    %90 = vst.msk [vmem:[%s89] sm:$0x1] %vm88, %v87
    %s91 = scalar_lea.vmem %s0, 14
    %v92 = vld [vmem:[%s91] sm:$0x1]
    %93 = vrot.lane.b32.xlu0 %v92, 24
    %v94 = vpop.permute.xlu0 %93
    %vm95 = vcmask 359616
    %s96 = scalar_lea.vmem [#allocation0], 2
    %97 = vst.msk [vmem:[%s96] sm:$0x1] %vm95, %v94
    %s98 = scalar_lea.vmem %s0, 1
    %v99 = vld [vmem:[%s98] sm:$0x1]
    %100 = vrot.lane.b32.xlu0 %v99, 20
    %v101 = vpop.permute.xlu0 %100
    %vm102 = vcmask 326816
    %103 = vst.msk [vmem:[#allocation0] sm:$0x1] %vm102, %v101
    %s104 = scalar_lea.vmem %s0, 7
    %v105 = vld [vmem:[%s104] sm:$0x1]
    %106 = vrot.lane.b32.xlu0 %v105, 12
    %v107 = vpop.permute.xlu0 %106
    %vm108 = vcmask 261216
    %s109 = scalar_lea.vmem [#allocation0], 1
    %110 = vst.msk [vmem:[%s109] sm:$0x1] %vm108, %v107
    %s111 = scalar_lea.vmem %s0, 13
    %v112 = vld [vmem:[%s111] sm:$0x1]
    %113 = vrot.lane.b32.xlu0 %v112, 4
    %v114 = vpop.permute.xlu0 %113
    %vm115 = vcmask 195616
    %s116 = scalar_lea.vmem [#allocation0], 2
    %117 = vst.msk [vmem:[%s116] sm:$0x1] %vm115, %v114
    %s119 = sshllo.u32 0, 4
    %v121 = vld [vmem:[#allocation0] sm:%s119]
    %s122 = sshllo.u32 0, 4
    %123 = vst [vmem:[%s1] sm:%s122] %v121

// kernel: gcn_forward.1
$region0: #{gcn_forward.1}
  #allocation0 [shape = 'u32[]', space=smem, size = 0x4, offset = 0x4, fixed_abs, tag = 'smem constant byte address 0x4 - core index']
  #allocation1 [shape = 'u32[144,128]{1,0:T(1,128)}', space=vmem, size = 0x12000, scoped, tag = 'internal scratch']
  #allocation2 [shape = 'f32[8,400]{1,0:T(8,128)}', space=vmem, size = 0x4000, scoped, tag = 'scratch operand']
  %s0 = inlined_call_operand.vmem [shape: f32[2,4,404], index: 0, kind: input, shape index: {}]
  %s1 = inlined_call_operand.vmem [shape: f32[8,20], index: 1, kind: input, shape index: {}]
  %s2 = inlined_call_operand.vmem [shape: f32[8,40], index: 2, kind: input, shape index: {}]
  %s3 = inlined_call_operand.vmem [shape: f32[8,20], index: 3, kind: input, shape index: {}]
  %s4 = inlined_call_operand.vmem [shape: f32[8,40], index: 4, kind: input, shape index: {}]
  %s5 = inlined_call_operand.vmem [shape: f32[8,320], index: 5, kind: input, shape index: {}]
  %s6 = inlined_call_operand.vmem [shape: f32[8,400], index: 6, kind: input, shape index: {}]
  %s7 = inlined_call_operand.vmem [shape: f32[8,1], index: 7, kind: input, shape index: {}]
  %s8 = inlined_call_operand.vmem [shape: f32[2,8,320], index: 8, kind: output, shape index: {}]
  %s9 = sld [smem:[#allocation0]]
  $region65: #{gcn_forward.1} parent=0
    _
  %s11 = ssub.s32 1, %s9
  %s12 = scalar_select 0, %s11, %s9
  loop: start=0, step=1, limit=4
  $region2: #{gcn_forward.1} parent=0 // loop_pre_header
    _
  $region3: #{gcn_forward.1} parent=0 // loop_header
    %s14 = sphi 0, %s18
    %p15 = scmp.ge.s32.totalorder %s14, 4
    %s24 = sphi 0, %s26
    %s27 = sphi 0, %s24
    %s28 = sphi 0, %s27
    %s44 = sphi 0, %s28
    %s48 = sphi 0, %s48
    %s50 = sphi 0, %s48
    %s51 = sphi 0, %s50
    %s65 = sphi 0, %s51
    %s69 = sphi 0, %s69
    %s71 = sphi 0, %s69
    %s72 = sphi 0, %s71
    %s86 = sphi 0, %s72
    %s90 = sphi 0, %s90
    %s92 = sphi 0, %s90
    %s93 = sphi 0, %s92
    %s107 = sphi 0, %s93
    %s111 = sphi 0, %s111
    %s113 = sphi 0, %s111
    %s114 = sphi 0, %s113
    %s128 = sphi 0, %s114
    %s132 = sphi 0, %s132
    %s134 = sphi 0, %s132
    %s135 = sphi 0, %s134
    %s149 = sphi 0, %s135
    %s153 = sphi 0, %s153
    %s155 = sphi 0, %s153
    %s156 = sphi 0, %s155
    %s170 = sphi 0, %s156
    %s174 = sphi 0, %s174
    %s176 = sphi 0, %s174
    %s177 = sphi 0, %s176
    %s191 = sphi 0, %s177
    %s197 = sphi 0, %s199
    %s200 = sphi 0, %s197
    %s201 = sphi 0, %s200
    %s217 = sphi 0, %s201
  $region4: #{gcn_forward.1} parent=0 // loop_header_branch
    %17 = sbr.rel (%p15) target = $region8
  $region5: #{gcn_forward.1} parent=0 // loop_body
    %s19 = ssub.s32 %s14, 1
    %s20 = ssub.s32 %s14, 2
    %s21 = sadd.s32 %s14, 1
    %s22 = ssub.s32 %s14, %s21
    %p23 = scmp.eq.s32.totalorder %s22, 0
    %s25 = sadd.s32 %s24, 1
    %s26 = scalar_select %p23, %s24, %s25
    %p29 = pneg %p23
    %p30 = scmp.eq.s32.totalorder %s14, 1
    %p31 = por %p29, %p30
    %p32 = scmp.ne.s32.totalorder %s24, %s27
    %p33 = scmp.eq.s32.totalorder %s14, 0
    %p34 = por %p32, %p33
    %p35 = scmp.ne.s32.totalorder %s24, %s27
    %p36 = scmp.eq.s32.totalorder %s19, 1
    %p37 = por %p35, %p36
    %p38 = scmp.ne.s32.totalorder %s27, %s28
    %p39 = scmp.eq.s32.totalorder %s19, 0
    %p40 = por %p38, %p39
    %p41 = scmp.ne.s32.totalorder %s27, %s28
    %p42 = scmp.eq.s32.totalorder %s20, 1
    %p43 = por %p41, %p42
    %p45 = scmp.ne.s32.totalorder %s28, %s44
    %p46 = scmp.eq.s32.totalorder %s20, 0
    %p47 = por %p45, %p46
    %s49 = sadd.s32 %s48, 1
    %p52 = scmp.eq.s32.totalorder %s14, 1
    %p53 = scmp.ne.s32.totalorder %s48, %s50
    %p54 = scmp.eq.s32.totalorder %s14, 0
    %p55 = por %p53, %p54
    %p56 = scmp.ne.s32.totalorder %s48, %s50
    %p57 = scmp.eq.s32.totalorder %s19, 1
    %p58 = por %p56, %p57
    %p59 = scmp.ne.s32.totalorder %s50, %s51
    %p60 = scmp.eq.s32.totalorder %s19, 0
    %p61 = por %p59, %p60
    %p62 = scmp.ne.s32.totalorder %s50, %s51
    %p63 = scmp.eq.s32.totalorder %s20, 1
    %p64 = por %p62, %p63
    %p66 = scmp.ne.s32.totalorder %s51, %s65
    %p67 = scmp.eq.s32.totalorder %s20, 0
    %p68 = por %p66, %p67
    %s70 = sadd.s32 %s69, 1
    %p73 = scmp.eq.s32.totalorder %s14, 1
    %p74 = scmp.ne.s32.totalorder %s69, %s71
    %p75 = scmp.eq.s32.totalorder %s14, 0
    %p76 = por %p74, %p75
    %p77 = scmp.ne.s32.totalorder %s69, %s71
    %p78 = scmp.eq.s32.totalorder %s19, 1
    %p79 = por %p77, %p78
    %p80 = scmp.ne.s32.totalorder %s71, %s72
    %p81 = scmp.eq.s32.totalorder %s19, 0
    %p82 = por %p80, %p81
    %p83 = scmp.ne.s32.totalorder %s71, %s72
    %p84 = scmp.eq.s32.totalorder %s20, 1
    %p85 = por %p83, %p84
    %p87 = scmp.ne.s32.totalorder %s72, %s86
    %p88 = scmp.eq.s32.totalorder %s20, 0
    %p89 = por %p87, %p88
    %s91 = sadd.s32 %s90, 1
    %p94 = scmp.eq.s32.totalorder %s14, 1
    %p95 = scmp.ne.s32.totalorder %s90, %s92
    %p96 = scmp.eq.s32.totalorder %s14, 0
    %p97 = por %p95, %p96
    %p98 = scmp.ne.s32.totalorder %s90, %s92
    %p99 = scmp.eq.s32.totalorder %s19, 1
    %p100 = por %p98, %p99
    %p101 = scmp.ne.s32.totalorder %s92, %s93
    %p102 = scmp.eq.s32.totalorder %s19, 0
    %p103 = por %p101, %p102
    %p104 = scmp.ne.s32.totalorder %s92, %s93
    %p105 = scmp.eq.s32.totalorder %s20, 1
    %p106 = por %p104, %p105
    %p108 = scmp.ne.s32.totalorder %s93, %s107
    %p109 = scmp.eq.s32.totalorder %s20, 0
    %p110 = por %p108, %p109
    %s112 = sadd.s32 %s111, 1
    %p115 = scmp.eq.s32.totalorder %s14, 1
    %p116 = scmp.ne.s32.totalorder %s111, %s113
    %p117 = scmp.eq.s32.totalorder %s14, 0
    %p118 = por %p116, %p117
    %p119 = scmp.ne.s32.totalorder %s111, %s113
    %p120 = scmp.eq.s32.totalorder %s19, 1
    %p121 = por %p119, %p120
    %p122 = scmp.ne.s32.totalorder %s113, %s114
    %p123 = scmp.eq.s32.totalorder %s19, 0
    %p124 = por %p122, %p123
    %p125 = scmp.ne.s32.totalorder %s113, %s114
    %p126 = scmp.eq.s32.totalorder %s20, 1
    %p127 = por %p125, %p126
    %p129 = scmp.ne.s32.totalorder %s114, %s128
    %p130 = scmp.eq.s32.totalorder %s20, 0
    %p131 = por %p129, %p130
    %s133 = sadd.s32 %s132, 1
    %p136 = scmp.eq.s32.totalorder %s14, 1
    %p137 = scmp.ne.s32.totalorder %s132, %s134
    %p138 = scmp.eq.s32.totalorder %s14, 0
    %p139 = por %p137, %p138
    %p140 = scmp.ne.s32.totalorder %s132, %s134
    %p141 = scmp.eq.s32.totalorder %s19, 1
    %p142 = por %p140, %p141
    %p143 = scmp.ne.s32.totalorder %s134, %s135
    %p144 = scmp.eq.s32.totalorder %s19, 0
    %p145 = por %p143, %p144
    %p146 = scmp.ne.s32.totalorder %s134, %s135
    %p147 = scmp.eq.s32.totalorder %s20, 1
    %p148 = por %p146, %p147
    %p150 = scmp.ne.s32.totalorder %s135, %s149
    %p151 = scmp.eq.s32.totalorder %s20, 0
    %p152 = por %p150, %p151
    %s154 = sadd.s32 %s153, 1
    %p157 = scmp.eq.s32.totalorder %s14, 1
    %p158 = scmp.ne.s32.totalorder %s153, %s155
    %p159 = scmp.eq.s32.totalorder %s14, 0
    %p160 = por %p158, %p159
    %p161 = scmp.ne.s32.totalorder %s153, %s155
    %p162 = scmp.eq.s32.totalorder %s19, 1
    %p163 = por %p161, %p162
    %p164 = scmp.ne.s32.totalorder %s155, %s156
    %p165 = scmp.eq.s32.totalorder %s19, 0
    %p166 = por %p164, %p165
    %p167 = scmp.ne.s32.totalorder %s155, %s156
    %p168 = scmp.eq.s32.totalorder %s20, 1
    %p169 = por %p167, %p168
    %p171 = scmp.ne.s32.totalorder %s156, %s170
    %p172 = scmp.eq.s32.totalorder %s20, 0
    %p173 = por %p171, %p172
    %s175 = sadd.s32 %s174, 1
    %p178 = scmp.eq.s32.totalorder %s14, 1
    %p179 = scmp.ne.s32.totalorder %s174, %s176
    %p180 = scmp.eq.s32.totalorder %s14, 0
    %p181 = por %p179, %p180
    %p182 = scmp.ne.s32.totalorder %s174, %s176
    %p183 = scmp.eq.s32.totalorder %s19, 1
    %p184 = por %p182, %p183
    %p185 = scmp.ne.s32.totalorder %s176, %s177
    %p186 = scmp.eq.s32.totalorder %s19, 0
    %p187 = por %p185, %p186
    %p188 = scmp.ne.s32.totalorder %s176, %s177
    %p189 = scmp.eq.s32.totalorder %s20, 1
    %p190 = por %p188, %p189
    %p192 = scmp.ne.s32.totalorder %s177, %s191
    %p193 = scmp.eq.s32.totalorder %s20, 0
    %p194 = por %p192, %p193
    %s195 = ssub.s32 %s14, %s21
    %p196 = scmp.eq.s32.totalorder %s195, 0
    %s198 = sadd.s32 %s197, 1
    %s199 = scalar_select %p196, %s197, %s198
    %p202 = pneg %p196
    %p203 = scmp.eq.s32.totalorder %s14, 1
    %p204 = por %p202, %p203
    %p205 = scmp.ne.s32.totalorder %s197, %s200
    %p206 = scmp.eq.s32.totalorder %s14, 0
    %p207 = por %p205, %p206
    %p208 = scmp.ne.s32.totalorder %s197, %s200
    %p209 = scmp.eq.s32.totalorder %s19, 1
    %p210 = por %p208, %p209
    %p211 = scmp.ne.s32.totalorder %s200, %s201
    %p212 = scmp.eq.s32.totalorder %s19, 0
    %p213 = por %p211, %p212
    %p214 = scmp.ne.s32.totalorder %s200, %s201
    %p215 = scmp.eq.s32.totalorder %s20, 1
    %p216 = por %p214, %p215
    %p218 = scmp.ne.s32.totalorder %s201, %s217
    %p219 = scmp.eq.s32.totalorder %s20, 0
    %p220 = por %p218, %p219
    %p221 = scmp.le.s32.totalorder 1, %s14
    %p222 = scmp.lt.s32.totalorder %s14, 3
    %p223 = pnand %p221, %p222
    %p224 = pneg %p223
    // Predicated region
    $region9: #{gcn_forward.1} parent=5 // pred_check
      _
    $region10: #{gcn_forward.1} parent=5 // pred_check_branch
      %226 = sbr.rel (%p223) target = $region12
    $region11: #{gcn_forward.1} parent=5 // pred_region
      %s227 = ssub.s32 %s14, 1
      // Predicated region
      $region13: #{gcn_forward.1} parent=11 // pred_check
        %p228 = pneg %p61
      $region14: #{gcn_forward.1} parent=11 // pred_check_branch
        %230 = sbr.rel (%p228) target = $region16
      $region15: #{gcn_forward.1} parent=11 // pred_region
        _
      $region16: #{gcn_forward.1} parent=11 // pred_fallthru
        _
      // Predicated region
      $region17: #{gcn_forward.1} parent=11 // pred_check
        %p231 = pneg %p82
      $region18: #{gcn_forward.1} parent=11 // pred_check_branch
        %233 = sbr.rel (%p231) target = $region20
      $region19: #{gcn_forward.1} parent=11 // pred_region
        _
      $region20: #{gcn_forward.1} parent=11 // pred_fallthru
        _
      // Predicated region
      $region21: #{gcn_forward.1} parent=11 // pred_check
        %p234 = pneg %p103
      $region22: #{gcn_forward.1} parent=11 // pred_check_branch
        %236 = sbr.rel (%p234) target = $region24
      $region23: #{gcn_forward.1} parent=11 // pred_region
        _
      $region24: #{gcn_forward.1} parent=11 // pred_fallthru
        _
      // Predicated region
      $region25: #{gcn_forward.1} parent=11 // pred_check
        %p237 = pneg %p124
      $region26: #{gcn_forward.1} parent=11 // pred_check_branch
        %239 = sbr.rel (%p237) target = $region28
      $region27: #{gcn_forward.1} parent=11 // pred_region
        _
      $region28: #{gcn_forward.1} parent=11 // pred_fallthru
        _
      // Predicated region
      $region29: #{gcn_forward.1} parent=11 // pred_check
        %p240 = pneg %p145
      $region30: #{gcn_forward.1} parent=11 // pred_check_branch
        %242 = sbr.rel (%p240) target = $region32
      $region31: #{gcn_forward.1} parent=11 // pred_region
        _
      $region32: #{gcn_forward.1} parent=11 // pred_fallthru
        _
      // Predicated region
      $region33: #{gcn_forward.1} parent=11 // pred_check
        %p243 = pneg %p166
      $region34: #{gcn_forward.1} parent=11 // pred_check_branch
        %245 = sbr.rel (%p243) target = $region36
      $region35: #{gcn_forward.1} parent=11 // pred_region
        _
      $region36: #{gcn_forward.1} parent=11 // pred_fallthru
        _
      // Predicated region
      $region37: #{gcn_forward.1} parent=11 // pred_check
        %p246 = pneg %p187
      $region38: #{gcn_forward.1} parent=11 // pred_check_branch
        %248 = sbr.rel (%p246) target = $region40
      $region39: #{gcn_forward.1} parent=11 // pred_region
        _
      $region40: #{gcn_forward.1} parent=11 // pred_fallthru
        _
    $region12: #{gcn_forward.1} parent=5 // pred_fallthru
      _
    %p249 = scmp.lt.s32.totalorder %s14, 2
    // Predicated region
    $region41: #{gcn_forward.1} parent=5 // pred_check
      %p250 = pneg %p249
    $region42: #{gcn_forward.1} parent=5 // pred_check_branch
      %252 = sbr.rel (%p250) target = $region44
    $region43: #{gcn_forward.1} parent=5 // pred_region
      // Predicated region
      $region45: #{gcn_forward.1} parent=43 // pred_check
        %p253 = pneg %p34
      $region46: #{gcn_forward.1} parent=43 // pred_check_branch
        %255 = sbr.rel (%p253) target = $region48
      $region47: #{gcn_forward.1} parent=43 // pred_region
        %p256 = scmp.lt.s32.totalorder %s14, 1
        %s257 = scalar_select %p256, %s14, 1
        %s258 = smul.addr %s257, 4
        %s259 = smul.addr %s258, 4
        %s260 = scalar_lea.vmem %s0, %s259
      $region48: #{gcn_forward.1} parent=43 // pred_fallthru
        _
    $region44: #{gcn_forward.1} parent=5 // pred_fallthru
      _
    %p261 = scmp.le.s32.totalorder 1, %s14
    %p262 = scmp.lt.s32.totalorder %s14, 3
    %p263 = pnand %p261, %p262
    %p264 = pneg %p263
    // Predicated region
    $region49: #{gcn_forward.1} parent=5 // pred_check
      _
    $region50: #{gcn_forward.1} parent=5 // pred_check_branch
      %266 = sbr.rel (%p263) target = $region52
    $region51: #{gcn_forward.1} parent=5 // pred_region
      %s267 = ssub.s32 %s14, 1
      %p268 = scmp.lt.s32.totalorder %s19, 1
      %s269 = scalar_select %p268, %s19, 1
      %s270 = smul.addr %s269, 4
      %s271 = smul.addr %s270, 4
      %s272 = scalar_lea.vmem %s0, %s271
      %p273 = pneg %p40
      %p274 = pneg %p37
      %p275 = pneg %p61
      %p276 = pneg %p58
      %p277 = pneg %p82
      %p278 = pneg %p79
      %p279 = pneg %p103
      %p280 = pneg %p100
      %p281 = pneg %p124
      %p282 = pneg %p121
      %p283 = pneg %p145
      %p284 = pneg %p142
      %p285 = pneg %p166
      %p286 = pneg %p163
      %p287 = pneg %p187
      %p288 = pneg %p184
      %p289 = pneg %p213
      %p290 = pneg %p210
      %p291 = scmp.lt.s32.totalorder %s19, 1
      %s292 = scalar_select %p291, %s19, 1
      %s293 = smul.addr %s292, 3
      %s294 = smul.addr %s293, 8
      %s295 = scalar_lea.vmem %s8, %s294
      %p296 = scmp.lt.s32.totalorder %s19, 1
      %s297 = scalar_select %p296, %s19, 1
      %s298 = smul.addr %s297, 4
      %s299 = smul.addr %s298, 4
      %s300 = scalar_lea.vmem %s0, %s299
      %p301 = scmp.lt.s32.totalorder %s19, 1
      %s302 = scalar_select %p301, %s19, 1
      %s303 = smul.addr %s302, 3
      %s304 = smul.addr %s303, 8
      %s305 = scalar_lea.vmem %s8, %s304
      %v306 = vld [vmem:[%s300] sm:$0xff]
      %v307 = vld [vmem:[%s300 + $0x8] sm:$0xf]
      %v308 = vld [vmem:[%s300 + $0x8] sm:$0xff]
      %v311 = vcombine.high %v306, %v306
      %v313 = vcombine.low %v306, %v306
      %v314 = vcombine.low %v307, %v307
      %315 = vrot.lane.b32.xlu0 %v313, 108
      %v316 = vpop.permute.xlu0 %315
      %317 = vrot.lane.b32.xlu0 %v306, 108
      %v318 = vpop.permute.xlu0 %317
      %319 = vrot.lane.b32.xlu0 %v314, 108
      %v320 = vpop.permute.xlu0 %319
      %vm321 = vcmask 883712
      %v322 = vsel %vm321, %v316, %v318
      %v323 = vsel %vm321, %v318, %v320
      %327 = vrot.lane.b32.xlu0 %v306, 88
      %v328 = vpop.permute.xlu0 %327
      %329 = vrot.lane.b32.xlu0 %v311, 88
      %v330 = vpop.permute.xlu0 %329
      %331 = vrot.lane.b32.xlu0 %v307, 88
      %v332 = vpop.permute.xlu0 %331
      %vm333 = vcmask 719872
      %v334 = vsel %vm333, %v328, %v330
      %v335 = vsel %vm333, %v330, %v332
      %339 = vrot.lane.b32.xlu0 %v313, 68
      %v340 = vpop.permute.xlu0 %339
      %341 = vrot.lane.b32.xlu0 %v306, 68
      %v342 = vpop.permute.xlu0 %341
      %343 = vrot.lane.b32.xlu0 %v314, 68
      %v344 = vpop.permute.xlu0 %343
      %vm345 = vcmask 556032
      %v346 = vsel %vm345, %v340, %v342
      %v347 = vsel %vm345, %v342, %v344
      %v352 = vcombine.high %v308, %v308
      %353 = vrot.lane.b32.xlu0 %v306, 48
      %v354 = vpop.permute.xlu0 %353
      %355 = vrot.lane.b32.xlu0 %v311, 48
      %v356 = vpop.permute.xlu0 %355
      %357 = vrot.lane.b32.xlu0 %v308, 48
      %v358 = vpop.permute.xlu0 %357
      %359 = vrot.lane.b32.xlu0 %v352, 48
      %v360 = vpop.permute.xlu0 %359
      %vm361 = vcmask 392192
      %v362 = vsel %vm361, %v354, %v356
      %v363 = vsel %vm361, %v356, %v358
      %v364 = vsel %vm361, %v358, %v360
      %vm365 = vcmask 1043456
      %v366 = vsel %vm365, %v306, %v322
      %v367 = vsel %vm365, %v311, %v323
      %v368 = vsel %vm365, %v307, %v320
      %v369 = vsel %vm365, %v334, %v346
      %v370 = vsel %vm365, %v335, %v347
      %v371 = vsel %vm365, %v332, %v344
      %v372 = vld [vmem:[%s1] sm:$0xff]
      %v373 = vld [vmem:[%s5] sm:$0xff]
      %v374 = vld [vmem:[%s5 + $0x8] sm:$0xff]
      %v375 = vld [vmem:[%s5 + $0x10] sm:$0xff]
      %382 = vrot.lane.b32.xlu0 %v366, 126
      %v383 = vpop.permute.xlu0 %382
      %384 = vrot.lane.b32.xlu0 %v367, 126
      %v385 = vpop.permute.xlu0 %384
      %386 = vrot.lane.b32.xlu0 %v368, 126
      %v387 = vpop.permute.xlu0 %386
      %388 = vrot.lane.b32.xlu0 %v369, 126
      %v389 = vpop.permute.xlu0 %388
      %390 = vrot.lane.b32.xlu0 %v370, 126
      %v391 = vpop.permute.xlu0 %390
      %392 = vrot.lane.b32.xlu0 %v371, 126
      %v393 = vpop.permute.xlu0 %392
      %394 = vrot.lane.b32.xlu0 %v362, 126
      %v395 = vpop.permute.xlu0 %394
      %396 = vrot.lane.b32.xlu0 %v363, 126
      %v397 = vpop.permute.xlu0 %396
      %398 = vrot.lane.b32.xlu0 %v364, 126
      %v399 = vpop.permute.xlu0 %398
      %vm400 = vcmask 1031168
      %v401 = vsel %vm400, %v383, %v385
      %v402 = vsel %vm400, %v385, %v387
      %v403 = vsel %vm400, %v389, %v391
      %v404 = vsel %vm400, %v391, %v393
      %v405 = vsel %vm400, %v395, %v397
      %v406 = vsel %vm400, %v397, %v399
      %vm413 = vcmask 162816
      %v415 = vsel %vm413, %v372, 0
      %v417 = vsel %vm365, %v405, 0
      %v419 = vsel %vm365, %v406, 0
      %v421 = vsel %vm365, %v399, 0
      %423 = vmatprep.subr.mxu0 %v402
      %424 = vmatpush1.msra.mxu0 %v401
      %425 = vmatprep.subr.mxu0 %v404
      %426 = vmatpush1.msra.mxu0 %v403
      %427 = vmatprep.subr.mxu0 %v419
      %428 = vmatpush1.msra.mxu0 %v417
      %429 = vmatprep.subr.mxu0 0.0
      %430 = vmatpush1.msra.mxu0 0.0
      %431 = vmatprep.subr.mxu0 0.0
      %432 = vmatpush1.msra.mxu0 0.0
      %433 = vmatprep.subr.mxu0 0.0
      %434 = vmatpush1.msra.mxu0 0.0
      %435 = vmatprep.subr.mxu0 0.0
      %436 = vmatpush1.msra.mxu0 0.0
      %437 = vmatprep.subr.mxu0 0.0
      %438 = vmatpush1.msra.mxu0 0.0
      %439 = vmatprep.subr.mxu0 0.0
      %440 = vmatpush1.msra.mxu0 0.0
      %441 = vmatprep.subr.mxu0 0.0
      %442 = vmatpush1.msra.mxu0 0.0
      %443 = vmatprep.subr.mxu0 0.0
      %444 = vmatpush1.msra.mxu0 0.0
      %445 = vmatprep.subr.mxu0 0.0
      %446 = vmatpush1.msra.mxu0 0.0
      %447 = vmatprep.subr.mxu0 0.0
      %448 = vmatpush1.msra.mxu0 0.0
      %449 = vmatprep.subr.mxu0 0.0
      %450 = vmatpush1.msra.mxu0 0.0
      %451 = vmatprep.subr.mxu0 0.0
      %452 = vmatpush1.msra.mxu0 0.0
      %453 = vmatprep.subr.mxu0 0.0
      %454 = vmatpush1.msra.mxu0 0.0
      %455 = vmatprep.subr.mxu0 0.0
      %456 = vmatpush1.msra.mxu0 0.0
      %457 = vmatprep.subr.mxu0 0.0
      %458 = vmatpush1.msra.mxu0 0.0
      %459 = vmatprep.subr.mxu0 0.0
      %460 = vmatpush1.msra.mxu0 0.0
      %461 = vmatprep.subr.mxu0 0.0
      %462 = vmatpush1.msra.mxu0 0.0
      %463 = vmatprep.subr.mxu0 0.0
      %464 = vmatpush1.msra.mxu0 0.0
      %465 = vmatprep.subr.mxu0 0.0
      %466 = vmatpush1.msra.mxu0 0.0
      %467 = vmatprep.subr.mxu0 0.0
      %468 = vmatpush1.msra.mxu0 0.0
      %469 = vmatprep.subr.mxu0 0.0
      %470 = vmatpush1.msra.mxu0 0.0
      %471 = vmatprep.subr.mxu0 0.0
      %472 = vmatpush1.msra.mxu0 0.0
      %473 = vmatprep.subr.mxu0 0.0
      %474 = vmatpush1.msra.mxu0 0.0
      %475 = vmatprep.subr.mxu0 0.0
      %476 = vmatpush1.msra.mxu0 0.0
      %477 = vmatprep.subr.mxu0 0.0
      %478 = vmatpush1.msra.mxu0 0.0
      %479 = vmatprep.subr.mxu0 0.0
      %480 = vmatpush1.msra.mxu0 0.0
      %481 = vmatprep.subr.mxu0 0.0
      %482 = vmatpush1.msra.mxu0 0.0
      %483 = vmatprep.subr.mxu0 0.0
      %484 = vmatpush1.msra.mxu0 0.0
      %485 = vmatprep.subr.mxu0 0.0
      %486 = vmatpush1.msra.mxu0 0.0
      %487 = vmatprep.mubr.f32.mxu0 0.0
      %488 = vmatmul.mubr.f32.gmra.mrb[0].mxu0 %v415
      %v489 = vpop.f32.mrb[0].mxu0
      %v490 = vadd.f32 %v373, %v489
      %v491 = vpop.f32.mrb[0].mxu0
      %v492 = vadd.f32 %v374, %v491
      %493 = vdwg.mxu0
      %494 = vmatprep.subr.mxu0 0.0
      %495 = vmatpush1.msra.mxu0 %v387
      %496 = vmatprep.subr.mxu0 0.0
      %497 = vmatpush1.msra.mxu0 %v393
      %498 = vmatprep.subr.mxu0 0.0
      %499 = vmatpush1.msra.mxu0 %v421
      %500 = vmatprep.subr.mxu0 0.0
      %501 = vmatpush1.msra.mxu0 0.0
      %502 = vmatprep.subr.mxu0 0.0
      %503 = vmatpush1.msra.mxu0 0.0
      %504 = vmatprep.subr.mxu0 0.0
      %505 = vmatpush1.msra.mxu0 0.0
      %506 = vmatprep.subr.mxu0 0.0
      %507 = vmatpush1.msra.mxu0 0.0
      %508 = vmatprep.subr.mxu0 0.0
      %509 = vmatpush1.msra.mxu0 0.0
      %510 = vmatprep.subr.mxu0 0.0
      %511 = vmatpush1.msra.mxu0 0.0
      %512 = vmatprep.subr.mxu0 0.0
      %513 = vmatpush1.msra.mxu0 0.0
      %514 = vmatprep.subr.mxu0 0.0
      %515 = vmatpush1.msra.mxu0 0.0
      %516 = vmatprep.subr.mxu0 0.0
      %517 = vmatpush1.msra.mxu0 0.0
      %518 = vmatprep.subr.mxu0 0.0
      %519 = vmatpush1.msra.mxu0 0.0
      %520 = vmatprep.subr.mxu0 0.0
      %521 = vmatpush1.msra.mxu0 0.0
      %522 = vmatprep.subr.mxu0 0.0
      %523 = vmatpush1.msra.mxu0 0.0
      %524 = vmatprep.subr.mxu0 0.0
      %525 = vmatpush1.msra.mxu0 0.0
      %526 = vmatprep.subr.mxu0 0.0
      %527 = vmatpush1.msra.mxu0 0.0
      %528 = vmatprep.subr.mxu0 0.0
      %529 = vmatpush1.msra.mxu0 0.0
      %530 = vmatprep.subr.mxu0 0.0
      %531 = vmatpush1.msra.mxu0 0.0
      %532 = vmatprep.subr.mxu0 0.0
      %533 = vmatpush1.msra.mxu0 0.0
      %534 = vmatprep.subr.mxu0 0.0
      %535 = vmatpush1.msra.mxu0 0.0
      %536 = vmatprep.subr.mxu0 0.0
      %537 = vmatpush1.msra.mxu0 0.0
      %538 = vmatprep.subr.mxu0 0.0
      %539 = vmatpush1.msra.mxu0 0.0
      %540 = vmatprep.subr.mxu0 0.0
      %541 = vmatpush1.msra.mxu0 0.0
      %542 = vmatprep.subr.mxu0 0.0
      %543 = vmatpush1.msra.mxu0 0.0
      %544 = vmatprep.subr.mxu0 0.0
      %545 = vmatpush1.msra.mxu0 0.0
      %546 = vmatprep.subr.mxu0 0.0
      %547 = vmatpush1.msra.mxu0 0.0
      %548 = vmatprep.subr.mxu0 0.0
      %549 = vmatpush1.msra.mxu0 0.0
      %550 = vmatprep.subr.mxu0 0.0
      %551 = vmatpush1.msra.mxu0 0.0
      %552 = vmatprep.subr.mxu0 0.0
      %553 = vmatpush1.msra.mxu0 0.0
      %554 = vmatprep.subr.mxu0 0.0
      %555 = vmatpush1.msra.mxu0 0.0
      %556 = vmatprep.subr.mxu0 0.0
      %557 = vmatpush1.msra.mxu0 0.0
      %558 = vmatprep.mubr.f32.mxu0 0.0
      %559 = vmatmul.mubr.f32.gmra.mrb[0].mxu0 %v415
      %v560 = vpop.f32.mrb[0].mxu0
      %v561 = vadd.f32 %v375, %v560
      %v562 = vpop.f32.mrb[0].mxu0
      %563 = vdwg.mxu0
      %vm564 = vcmask 15360
      %565 = vst.msk [vmem:[#allocation2] sm:$0xff] %vm564, 0.0
      %569 = vrot.lane.b32.xlu0 %v490, 2
      %v570 = vpop.permute.xlu0 %569
      %571 = vrot.lane.b32.xlu0 %v492, 2
      %v572 = vpop.permute.xlu0 %571
      %573 = vrot.lane.b32.xlu0 %v561, 2
      %v574 = vpop.permute.xlu0 %573
      %v575 = vsel %vm564, %v570, %v572
      %v576 = vsel %vm564, %v572, %v574
      %vm580 = vcmask 1047568
      %581 = vst.msk [vmem:[#allocation2] sm:$0xff] %vm580, %v570
      %582 = vst [vmem:[#allocation2 + $0x8] sm:$0xff] %v575
      %vm583 = vcmask 539648
      %584 = vst.msk [vmem:[#allocation2 + $0x10] sm:$0xff] %vm583, %v576
      %vm585 = vcmask 556560
      %586 = vst.msk [vmem:[#allocation2 + $0x10] sm:$0xff] %vm585, 0.0
      %v587 = vld [vmem:[#allocation2] sm:$0xff]
      %v588 = vld [vmem:[#allocation2 + $0x8] sm:$0xff]
      %v589 = vld [vmem:[#allocation2 + $0x10] sm:$0xff]
      %593 = vrot.lane.b32.xlu0 %v587, 127
      %v594 = vpop.permute.xlu0 %593
      %595 = vrot.lane.b32.xlu0 %v588, 127
      %v596 = vpop.permute.xlu0 %595
      %597 = vrot.lane.b32.xlu0 %v589, 127
      %v598 = vpop.permute.xlu0 %597
      %vm599 = vcmask 1039360
      %v600 = vsel %vm599, %v594, %v596
      %v601 = vsel %vm599, %v596, %v598
      %605 = vrot.lane.b32.xlu0 %v587, 126
      %v606 = vpop.permute.xlu0 %605
      %607 = vrot.lane.b32.xlu0 %v588, 126
      %v608 = vpop.permute.xlu0 %607
      %609 = vrot.lane.b32.xlu0 %v589, 126
      %v610 = vpop.permute.xlu0 %609
      %v611 = vsel %vm400, %v606, %v608
      %v612 = vsel %vm400, %v608, %v610
      %616 = vrot.lane.b32.xlu0 %v587, 125
      %v617 = vpop.permute.xlu0 %616
      %618 = vrot.lane.b32.xlu0 %v588, 125
      %v619 = vpop.permute.xlu0 %618
      %620 = vrot.lane.b32.xlu0 %v589, 125
      %v621 = vpop.permute.xlu0 %620
      %vm622 = vcmask 1022976
      %v623 = vsel %vm622, %v617, %v619
      %v624 = vsel %vm622, %v619, %v621
      %628 = vrot.lane.b32.xlu0 %v587, 124
      %v629 = vpop.permute.xlu0 %628
      %630 = vrot.lane.b32.xlu0 %v588, 124
      %v631 = vpop.permute.xlu0 %630
      %632 = vrot.lane.b32.xlu0 %v589, 124
      %v633 = vpop.permute.xlu0 %632
      %vm634 = vcmask 1014784
      %v635 = vsel %vm634, %v629, %v631
      %v636 = vsel %vm634, %v631, %v633
      %v640 = vld [vmem:[%s2] sm:$0xff]
      %v641 = vld [vmem:[%s300] sm:$0xff]
      %v642 = vld [vmem:[%s300 + $0x8] sm:$0xff]
      %v645 = vcombine.high %v641, %v641
      %v646 = vcombine.high %v642, %v642
      %v649 = vcombine.low %v641, %v641
      %v650 = vcombine.low %v642, %v642
      %651 = vrot.lane.b32.xlu0 %v649, 127
      %v652 = vpop.permute.xlu0 %651
      %653 = vrot.lane.b32.xlu0 %v641, 127
      %v654 = vpop.permute.xlu0 %653
      %655 = vrot.lane.b32.xlu0 %v650, 127
      %v656 = vpop.permute.xlu0 %655
      %657 = vrot.lane.b32.xlu0 %v642, 127
      %v658 = vpop.permute.xlu0 %657
      %v659 = vsel %vm599, %v652, %v654
      %v660 = vsel %vm599, %v654, %v656
      %v661 = vsel %vm599, %v656, %v658
      %666 = vrot.lane.b32.xlu0 %v641, 126
      %v667 = vpop.permute.xlu0 %666
      %668 = vrot.lane.b32.xlu0 %v645, 126
      %v669 = vpop.permute.xlu0 %668
      %670 = vrot.lane.b32.xlu0 %v642, 126
      %v671 = vpop.permute.xlu0 %670
      %672 = vrot.lane.b32.xlu0 %v646, 126
      %v673 = vpop.permute.xlu0 %672
      %v674 = vsel %vm400, %v667, %v669
      %v675 = vsel %vm400, %v669, %v671
      %v676 = vsel %vm400, %v671, %v673
      %681 = vrot.lane.b32.xlu0 %v649, 125
      %v682 = vpop.permute.xlu0 %681
      %683 = vrot.lane.b32.xlu0 %v641, 125
      %v684 = vpop.permute.xlu0 %683
      %685 = vrot.lane.b32.xlu0 %v650, 125
      %v686 = vpop.permute.xlu0 %685
      %687 = vrot.lane.b32.xlu0 %v642, 125
      %v688 = vpop.permute.xlu0 %687
      %v689 = vsel %vm622, %v682, %v684
      %v690 = vsel %vm622, %v684, %v686
      %v691 = vsel %vm622, %v686, %v688
      %696 = vrot.lane.b32.xlu0 %v641, 124
      %v697 = vpop.permute.xlu0 %696
      %698 = vrot.lane.b32.xlu0 %v645, 124
      %v699 = vpop.permute.xlu0 %698
      %700 = vrot.lane.b32.xlu0 %v642, 124
      %v701 = vpop.permute.xlu0 %700
      %702 = vrot.lane.b32.xlu0 %v646, 124
      %v703 = vpop.permute.xlu0 %702
      %v704 = vsel %vm634, %v697, %v699
      %v705 = vsel %vm634, %v699, %v701
      %v706 = vsel %vm634, %v701, %v703
      %v707 = vsel %vm365, %v641, %v659
      %v708 = vsel %vm365, %v645, %v660
      %v709 = vsel %vm365, %v642, %v661
      %v710 = vsel %vm365, %v646, %v658
      %v711 = vsel %vm365, %v674, %v689
      %v712 = vsel %vm365, %v675, %v690
      %v713 = vsel %vm365, %v676, %v691
      %v714 = vsel %vm365, %v673, %v688
      %v715 = vld [vmem:[%s3] sm:$0xff]
      %v716 = vld [vmem:[%s6] sm:$0xff]
      %v717 = vld [vmem:[%s6 + $0x8] sm:$0xff]
      %v718 = vld [vmem:[%s6 + $0x10] sm:$0xff]
      %v719 = vld [vmem:[%s6 + $0x18] sm:$0xff]
      %v721 = vsel %vm413, %v715, 0
      %v723 = vsel %vm365, %v704, 0
      %v725 = vsel %vm365, %v705, 0
      %v727 = vsel %vm365, %v706, 0
      %v729 = vsel %vm365, %v703, 0
      %731 = vmatprep.subr.mxu0 %v708
      %732 = vmatpush1.msra.mxu0 %v707
      %733 = vmatprep.subr.mxu0 %v712
      %734 = vmatpush1.msra.mxu0 %v711
      %735 = vmatprep.subr.mxu0 %v725
      %736 = vmatpush1.msra.mxu0 %v723
      %737 = vmatprep.subr.mxu0 0.0
      %738 = vmatpush1.msra.mxu0 0.0
      %739 = vmatprep.subr.mxu0 0.0
      %740 = vmatpush1.msra.mxu0 0.0
      %741 = vmatprep.subr.mxu0 0.0
      %742 = vmatpush1.msra.mxu0 0.0
      %743 = vmatprep.subr.mxu0 0.0
      %744 = vmatpush1.msra.mxu0 0.0
      %745 = vmatprep.subr.mxu0 0.0
      %746 = vmatpush1.msra.mxu0 0.0
      %747 = vmatprep.subr.mxu0 0.0
      %748 = vmatpush1.msra.mxu0 0.0
      %749 = vmatprep.subr.mxu0 0.0
      %750 = vmatpush1.msra.mxu0 0.0
      %751 = vmatprep.subr.mxu0 0.0
      %752 = vmatpush1.msra.mxu0 0.0
      %753 = vmatprep.subr.mxu0 0.0
      %754 = vmatpush1.msra.mxu0 0.0
      %755 = vmatprep.subr.mxu0 0.0
      %756 = vmatpush1.msra.mxu0 0.0
      %757 = vmatprep.subr.mxu0 0.0
      %758 = vmatpush1.msra.mxu0 0.0
      %759 = vmatprep.subr.mxu0 0.0
      %760 = vmatpush1.msra.mxu0 0.0
      %761 = vmatprep.subr.mxu0 0.0
      %762 = vmatpush1.msra.mxu0 0.0
      %763 = vmatprep.subr.mxu0 0.0
      %764 = vmatpush1.msra.mxu0 0.0
      %765 = vmatprep.subr.mxu0 0.0
      %766 = vmatpush1.msra.mxu0 0.0
      %767 = vmatprep.subr.mxu0 0.0
      %768 = vmatpush1.msra.mxu0 0.0
      %769 = vmatprep.subr.mxu0 0.0
      %770 = vmatpush1.msra.mxu0 0.0
      %771 = vmatprep.subr.mxu0 0.0
      %772 = vmatpush1.msra.mxu0 0.0
      %773 = vmatprep.subr.mxu0 0.0
      %774 = vmatpush1.msra.mxu0 0.0
      %775 = vmatprep.subr.mxu0 0.0
      %776 = vmatpush1.msra.mxu0 0.0
      %777 = vmatprep.subr.mxu0 0.0
      %778 = vmatpush1.msra.mxu0 0.0
      %779 = vmatprep.subr.mxu0 0.0
      %780 = vmatpush1.msra.mxu0 0.0
      %781 = vmatprep.subr.mxu0 0.0
      %782 = vmatpush1.msra.mxu0 0.0
      %783 = vmatprep.subr.mxu0 0.0
      %784 = vmatpush1.msra.mxu0 0.0
      %785 = vmatprep.subr.mxu0 0.0
      %786 = vmatpush1.msra.mxu0 0.0
      %787 = vmatprep.subr.mxu0 0.0
      %788 = vmatpush1.msra.mxu0 0.0
      %789 = vmatprep.subr.mxu0 0.0
      %790 = vmatpush1.msra.mxu0 0.0
      %791 = vmatprep.subr.mxu0 0.0
      %792 = vmatpush1.msra.mxu0 0.0
      %793 = vmatprep.subr.mxu0 0.0
      %794 = vmatpush1.msra.mxu0 0.0
      %795 = vmatprep.mubr.f32.mxu0 0.0
      %796 = vmatmul.mubr.f32.gmra.mrb[0].mxu0 %v721
      %v797 = vpop.f32.mrb[0].mxu0
      %v798 = vadd.f32 %v716, %v797
      %v799 = vpop.f32.mrb[0].mxu0
      %v800 = vadd.f32 %v717, %v799
      %801 = vdwg.mxu0
      %802 = vmatprep.subr.mxu0 %v710
      %803 = vmatpush1.msra.mxu0 %v709
      %804 = vmatprep.subr.mxu0 %v714
      %805 = vmatpush1.msra.mxu0 %v713
      %806 = vmatprep.subr.mxu0 %v729
      %807 = vmatpush1.msra.mxu0 %v727
      %808 = vmatprep.subr.mxu0 0.0
      %809 = vmatpush1.msra.mxu0 0.0
      %810 = vmatprep.subr.mxu0 0.0
      %811 = vmatpush1.msra.mxu0 0.0
      %812 = vmatprep.subr.mxu0 0.0
      %813 = vmatpush1.msra.mxu0 0.0
      %814 = vmatprep.subr.mxu0 0.0
      %815 = vmatpush1.msra.mxu0 0.0
      %816 = vmatprep.subr.mxu0 0.0
      %817 = vmatpush1.msra.mxu0 0.0
      %818 = vmatprep.subr.mxu0 0.0
      %819 = vmatpush1.msra.mxu0 0.0
      %820 = vmatprep.subr.mxu0 0.0
      %821 = vmatpush1.msra.mxu0 0.0
      %822 = vmatprep.subr.mxu0 0.0
      %823 = vmatpush1.msra.mxu0 0.0
      %824 = vmatprep.subr.mxu0 0.0
      %825 = vmatpush1.msra.mxu0 0.0
      %826 = vmatprep.subr.mxu0 0.0
      %827 = vmatpush1.msra.mxu0 0.0
      %828 = vmatprep.subr.mxu0 0.0
      %829 = vmatpush1.msra.mxu0 0.0
      %830 = vmatprep.subr.mxu0 0.0
      %831 = vmatpush1.msra.mxu0 0.0
      %832 = vmatprep.subr.mxu0 0.0
      %833 = vmatpush1.msra.mxu0 0.0
      %834 = vmatprep.subr.mxu0 0.0
      %835 = vmatpush1.msra.mxu0 0.0
      %836 = vmatprep.subr.mxu0 0.0
      %837 = vmatpush1.msra.mxu0 0.0
      %838 = vmatprep.subr.mxu0 0.0
      %839 = vmatpush1.msra.mxu0 0.0
      %840 = vmatprep.subr.mxu0 0.0
      %841 = vmatpush1.msra.mxu0 0.0
      %842 = vmatprep.subr.mxu0 0.0
      %843 = vmatpush1.msra.mxu0 0.0
      %844 = vmatprep.subr.mxu0 0.0
      %845 = vmatpush1.msra.mxu0 0.0
      %846 = vmatprep.subr.mxu0 0.0
      %847 = vmatpush1.msra.mxu0 0.0
      %848 = vmatprep.subr.mxu0 0.0
      %849 = vmatpush1.msra.mxu0 0.0
      %850 = vmatprep.subr.mxu0 0.0
      %851 = vmatpush1.msra.mxu0 0.0
      %852 = vmatprep.subr.mxu0 0.0
      %853 = vmatpush1.msra.mxu0 0.0
      %854 = vmatprep.subr.mxu0 0.0
      %855 = vmatpush1.msra.mxu0 0.0
      %856 = vmatprep.subr.mxu0 0.0
      %857 = vmatpush1.msra.mxu0 0.0
      %858 = vmatprep.subr.mxu0 0.0
      %859 = vmatpush1.msra.mxu0 0.0
      %860 = vmatprep.subr.mxu0 0.0
      %861 = vmatpush1.msra.mxu0 0.0
      %862 = vmatprep.subr.mxu0 0.0
      %863 = vmatpush1.msra.mxu0 0.0
      %864 = vmatprep.subr.mxu0 0.0
      %865 = vmatpush1.msra.mxu0 0.0
      %866 = vmatprep.mubr.f32.mxu0 0.0
      %867 = vmatmul.mubr.f32.gmra.mrb[0].mxu0 %v721
      %v868 = vpop.f32.mrb[0].mxu0
      %v869 = vadd.f32 %v718, %v868
      %v870 = vpop.f32.mrb[0].mxu0
      %v871 = vadd.f32 %v719, %v870
      %872 = vdwg.mxu0
      %873 = vst [vmem:[#allocation2] sm:$0xff] %v798
      %874 = vst [vmem:[#allocation2 + $0x8] sm:$0xff] %v800
      %875 = vst [vmem:[#allocation2 + $0x10] sm:$0xff] %v869
      %vm876 = vcmask 130048
      %877 = vst.msk [vmem:[#allocation2 + $0x18] sm:$0xff] %vm876, %v871
      %v878 = vld [vmem:[#allocation2] sm:$0xff]
      %v879 = vld [vmem:[#allocation2 + $0x8] sm:$0xff]
      %v880 = vld [vmem:[#allocation2 + $0x10] sm:$0xff]
      %v881 = vld [vmem:[#allocation2 + $0x18] sm:$0xff]
      %885 = vrot.lane.b32.xlu0 %v878, 108
      %v886 = vpop.permute.xlu0 %885
      %887 = vrot.lane.b32.xlu0 %v879, 108
      %v888 = vpop.permute.xlu0 %887
      %889 = vrot.lane.b32.xlu0 %v880, 108
      %v890 = vpop.permute.xlu0 %889
      %v891 = vsel %vm321, %v886, %v888
      %v892 = vsel %vm321, %v888, %v890
      %896 = vrot.lane.b32.xlu0 %v878, 88
      %v897 = vpop.permute.xlu0 %896
      %898 = vrot.lane.b32.xlu0 %v879, 88
      %v899 = vpop.permute.xlu0 %898
      %900 = vrot.lane.b32.xlu0 %v880, 88
      %v901 = vpop.permute.xlu0 %900
      %v902 = vsel %vm333, %v897, %v899
      %v903 = vsel %vm333, %v899, %v901
      %907 = vrot.lane.b32.xlu0 %v878, 68
      %v908 = vpop.permute.xlu0 %907
      %909 = vrot.lane.b32.xlu0 %v879, 68
      %v910 = vpop.permute.xlu0 %909
      %911 = vrot.lane.b32.xlu0 %v880, 68
      %v912 = vpop.permute.xlu0 %911
      %v913 = vsel %vm345, %v908, %v910
      %v914 = vsel %vm345, %v910, %v912
      %919 = vrot.lane.b32.xlu0 %v878, 48
      %v920 = vpop.permute.xlu0 %919
      %921 = vrot.lane.b32.xlu0 %v879, 48
      %v922 = vpop.permute.xlu0 %921
      %923 = vrot.lane.b32.xlu0 %v880, 48
      %v924 = vpop.permute.xlu0 %923
      %925 = vrot.lane.b32.xlu0 %v881, 48
      %v926 = vpop.permute.xlu0 %925
      %v927 = vsel %vm361, %v920, %v922
      %v928 = vsel %vm361, %v922, %v924
      %v929 = vsel %vm361, %v924, %v926
      %v933 = vld [vmem:[%s4] sm:$0xff]
      %vm934 = vcmask 326656
      %v936 = vsel %vm934, %v933, 0
      %938 = vmatprep.subr.mxu0 %v879
      %939 = vmatpush1.msra.mxu0 %v878
      %940 = vmatprep.subr.mxu0 %v892
      %941 = vmatpush1.msra.mxu0 %v891
      %942 = vmatprep.subr.mxu0 %v903
      %943 = vmatpush1.msra.mxu0 %v902
      %944 = vmatprep.subr.mxu0 %v914
      %945 = vmatpush1.msra.mxu0 %v913
      %946 = vmatprep.subr.mxu0 %v928
      %947 = vmatpush1.msra.mxu0 %v927
      %948 = vmatprep.subr.mxu0 0.0
      %949 = vmatpush1.msra.mxu0 0.0
      %950 = vmatprep.subr.mxu0 0.0
      %951 = vmatpush1.msra.mxu0 0.0
      %952 = vmatprep.subr.mxu0 0.0
      %953 = vmatpush1.msra.mxu0 0.0
      %954 = vmatprep.subr.mxu0 0.0
      %955 = vmatpush1.msra.mxu0 0.0
      %956 = vmatprep.subr.mxu0 0.0
      %957 = vmatpush1.msra.mxu0 0.0
      %958 = vmatprep.subr.mxu0 0.0
      %959 = vmatpush1.msra.mxu0 0.0
      %960 = vmatprep.subr.mxu0 0.0
      %961 = vmatpush1.msra.mxu0 0.0
      %962 = vmatprep.subr.mxu0 0.0
      %963 = vmatpush1.msra.mxu0 0.0
      %964 = vmatprep.subr.mxu0 0.0
      %965 = vmatpush1.msra.mxu0 0.0
      %966 = vmatprep.subr.mxu0 0.0
      %967 = vmatpush1.msra.mxu0 0.0
      %968 = vmatprep.subr.mxu0 0.0
      %969 = vmatpush1.msra.mxu0 0.0
      %970 = vmatprep.subr.mxu0 0.0
      %971 = vmatpush1.msra.mxu0 0.0
      %972 = vmatprep.subr.mxu0 0.0
      %973 = vmatpush1.msra.mxu0 0.0
      %974 = vmatprep.subr.mxu0 0.0
      %975 = vmatpush1.msra.mxu0 0.0
      %976 = vmatprep.subr.mxu0 0.0
      %977 = vmatpush1.msra.mxu0 0.0
      %978 = vmatprep.subr.mxu0 0.0
      %979 = vmatpush1.msra.mxu0 0.0
      %980 = vmatprep.subr.mxu0 0.0
      %981 = vmatpush1.msra.mxu0 0.0
      %982 = vmatprep.subr.mxu0 0.0
      %983 = vmatpush1.msra.mxu0 0.0
      %984 = vmatprep.subr.mxu0 0.0
      %985 = vmatpush1.msra.mxu0 0.0
      %986 = vmatprep.subr.mxu0 0.0
      %987 = vmatpush1.msra.mxu0 0.0
      %988 = vmatprep.subr.mxu0 0.0
      %989 = vmatpush1.msra.mxu0 0.0
      %990 = vmatprep.subr.mxu0 0.0
      %991 = vmatpush1.msra.mxu0 0.0
      %992 = vmatprep.subr.mxu0 0.0
      %993 = vmatpush1.msra.mxu0 0.0
      %994 = vmatprep.subr.mxu0 0.0
      %995 = vmatpush1.msra.mxu0 0.0
      %996 = vmatprep.subr.mxu0 0.0
      %997 = vmatpush1.msra.mxu0 0.0
      %998 = vmatprep.subr.mxu0 0.0
      %999 = vmatpush1.msra.mxu0 0.0
      %1000 = vmatprep.subr.mxu0 0.0
      %1001 = vmatpush1.msra.mxu0 0.0
      %1002 = vmatprep.mubr.f32.mxu0 0.0
      %1003 = vmatmul.mubr.f32.gmra.mrb[0].mxu0 %v936
      %v1004 = vpop.f32.mrb[0].mxu0
      %v1005 = vadd.f32 0.0, %v1004
      %v1006 = vpop.f32.mrb[0].mxu0
      %v1007 = vadd.f32 0.0, %v1006
      %1008 = vdwg.mxu0
      %1009 = vmatprep.subr.mxu0 0.0
      %1010 = vmatpush1.msra.mxu0 %v880
      %1011 = vmatprep.subr.mxu0 0.0
      %1012 = vmatpush1.msra.mxu0 %v890
      %1013 = vmatprep.subr.mxu0 0.0
      %1014 = vmatpush1.msra.mxu0 %v901
      %1015 = vmatprep.subr.mxu0 0.0
      %1016 = vmatpush1.msra.mxu0 %v912
      %1017 = vmatprep.subr.mxu0 0.0
      %1018 = vmatpush1.msra.mxu0 %v929
      %1019 = vmatprep.subr.mxu0 0.0
      %1020 = vmatpush1.msra.mxu0 0.0
      %1021 = vmatprep.subr.mxu0 0.0
      %1022 = vmatpush1.msra.mxu0 0.0
      %1023 = vmatprep.subr.mxu0 0.0
      %1024 = vmatpush1.msra.mxu0 0.0
      %1025 = vmatprep.subr.mxu0 0.0
      %1026 = vmatpush1.msra.mxu0 0.0
      %1027 = vmatprep.subr.mxu0 0.0
      %1028 = vmatpush1.msra.mxu0 0.0
      %1029 = vmatprep.subr.mxu0 0.0
      %1030 = vmatpush1.msra.mxu0 0.0
      %1031 = vmatprep.subr.mxu0 0.0
      %1032 = vmatpush1.msra.mxu0 0.0
      %1033 = vmatprep.subr.mxu0 0.0
      %1034 = vmatpush1.msra.mxu0 0.0
      %1035 = vmatprep.subr.mxu0 0.0
      %1036 = vmatpush1.msra.mxu0 0.0
      %1037 = vmatprep.subr.mxu0 0.0
      %1038 = vmatpush1.msra.mxu0 0.0
      %1039 = vmatprep.subr.mxu0 0.0
      %1040 = vmatpush1.msra.mxu0 0.0
      %1041 = vmatprep.subr.mxu0 0.0
      %1042 = vmatpush1.msra.mxu0 0.0
      %1043 = vmatprep.subr.mxu0 0.0
      %1044 = vmatpush1.msra.mxu0 0.0
      %1045 = vmatprep.subr.mxu0 0.0
      %1046 = vmatpush1.msra.mxu0 0.0
      %1047 = vmatprep.subr.mxu0 0.0
      %1048 = vmatpush1.msra.mxu0 0.0
      %1049 = vmatprep.subr.mxu0 0.0
      %1050 = vmatpush1.msra.mxu0 0.0
      %1051 = vmatprep.subr.mxu0 0.0
      %1052 = vmatpush1.msra.mxu0 0.0
      %1053 = vmatprep.subr.mxu0 0.0
      %1054 = vmatpush1.msra.mxu0 0.0
      %1055 = vmatprep.subr.mxu0 0.0
      %1056 = vmatpush1.msra.mxu0 0.0
      %1057 = vmatprep.subr.mxu0 0.0
      %1058 = vmatpush1.msra.mxu0 0.0
      %1059 = vmatprep.subr.mxu0 0.0
      %1060 = vmatpush1.msra.mxu0 0.0
      %1061 = vmatprep.subr.mxu0 0.0
      %1062 = vmatpush1.msra.mxu0 0.0
      %1063 = vmatprep.subr.mxu0 0.0
      %1064 = vmatpush1.msra.mxu0 0.0
      %1065 = vmatprep.subr.mxu0 0.0
      %1066 = vmatpush1.msra.mxu0 0.0
      %1067 = vmatprep.subr.mxu0 0.0
      %1068 = vmatpush1.msra.mxu0 0.0
      %1069 = vmatprep.subr.mxu0 0.0
      %1070 = vmatpush1.msra.mxu0 0.0
      %1071 = vmatprep.subr.mxu0 0.0
      %1072 = vmatpush1.msra.mxu0 0.0
      %1073 = vmatprep.mubr.f32.mxu0 0.0
      %1074 = vmatmul.mubr.f32.gmra.mrb[0].mxu0 %v936
      %v1075 = vpop.f32.mrb[0].mxu0
      %v1076 = vadd.f32 0.0, %v1075
      %v1077 = vpop.f32.mrb[0].mxu0
      %1078 = vdwg.mxu0
      %v1080 = vsel %vm934, %v640, 0
      %1082 = vmatprep.subr.mxu0 %v588
      %1083 = vmatpush1.msra.mxu0 %v587
      %1084 = vmatprep.subr.mxu0 %v601
      %1085 = vmatpush1.msra.mxu0 %v600
      %1086 = vmatprep.subr.mxu0 %v612
      %1087 = vmatpush1.msra.mxu0 %v611
      %1088 = vmatprep.subr.mxu0 %v624
      %1089 = vmatpush1.msra.mxu0 %v623
      %1090 = vmatprep.subr.mxu0 %v636
      %1091 = vmatpush1.msra.mxu0 %v635
      %1092 = vmatprep.subr.mxu0 0.0
      %1093 = vmatpush1.msra.mxu0 0.0
      %1094 = vmatprep.subr.mxu0 0.0
      %1095 = vmatpush1.msra.mxu0 0.0
      %1096 = vmatprep.subr.mxu0 0.0
      %1097 = vmatpush1.msra.mxu0 0.0
      %1098 = vmatprep.subr.mxu0 0.0
      %1099 = vmatpush1.msra.mxu0 0.0
      %1100 = vmatprep.subr.mxu0 0.0
      %1101 = vmatpush1.msra.mxu0 0.0
      %1102 = vmatprep.subr.mxu0 0.0
      %1103 = vmatpush1.msra.mxu0 0.0
      %1104 = vmatprep.subr.mxu0 0.0
      %1105 = vmatpush1.msra.mxu0 0.0
      %1106 = vmatprep.subr.mxu0 0.0
      %1107 = vmatpush1.msra.mxu0 0.0
      %1108 = vmatprep.subr.mxu0 0.0
      %1109 = vmatpush1.msra.mxu0 0.0
      %1110 = vmatprep.subr.mxu0 0.0
      %1111 = vmatpush1.msra.mxu0 0.0
      %1112 = vmatprep.subr.mxu0 0.0
      %1113 = vmatpush1.msra.mxu0 0.0
      %1114 = vmatprep.subr.mxu0 0.0
      %1115 = vmatpush1.msra.mxu0 0.0
      %1116 = vmatprep.subr.mxu0 0.0
      %1117 = vmatpush1.msra.mxu0 0.0
      %1118 = vmatprep.subr.mxu0 0.0
      %1119 = vmatpush1.msra.mxu0 0.0
      %1120 = vmatprep.subr.mxu0 0.0
      %1121 = vmatpush1.msra.mxu0 0.0
      %1122 = vmatprep.subr.mxu0 0.0
      %1123 = vmatpush1.msra.mxu0 0.0
      %1124 = vmatprep.subr.mxu0 0.0
      %1125 = vmatpush1.msra.mxu0 0.0
      %1126 = vmatprep.subr.mxu0 0.0
      %1127 = vmatpush1.msra.mxu0 0.0
      %1128 = vmatprep.subr.mxu0 0.0
      %1129 = vmatpush1.msra.mxu0 0.0
      %1130 = vmatprep.subr.mxu0 0.0
      %1131 = vmatpush1.msra.mxu0 0.0
      %1132 = vmatprep.subr.mxu0 0.0
      %1133 = vmatpush1.msra.mxu0 0.0
      %1134 = vmatprep.subr.mxu0 0.0
      %1135 = vmatpush1.msra.mxu0 0.0
      %1136 = vmatprep.subr.mxu0 0.0
      %1137 = vmatpush1.msra.mxu0 0.0
      %1138 = vmatprep.subr.mxu0 0.0
      %1139 = vmatpush1.msra.mxu0 0.0
      %1140 = vmatprep.subr.mxu0 0.0
      %1141 = vmatpush1.msra.mxu0 0.0
      %1142 = vmatprep.subr.mxu0 0.0
      %1143 = vmatpush1.msra.mxu0 0.0
      %1144 = vmatprep.subr.mxu0 0.0
      %1145 = vmatpush1.msra.mxu0 0.0
      %1146 = vmatprep.mubr.f32.mxu0 0.0
      %1147 = vmatmul.mubr.f32.gmra.mrb[0].mxu0 %v1080
      %v1148 = vpop.f32.mrb[0].mxu0
      %v1149 = vadd.f32 %v1005, %v1148
      %v1150 = vpop.f32.mrb[0].mxu0
      %v1151 = vadd.f32 %v1007, %v1150
      %1152 = vdwg.mxu0
      %1153 = vmatprep.subr.mxu0 0.0
      %1154 = vmatpush1.msra.mxu0 %v589
      %1155 = vmatprep.subr.mxu0 0.0
      %1156 = vmatpush1.msra.mxu0 %v598
      %1157 = vmatprep.subr.mxu0 0.0
      %1158 = vmatpush1.msra.mxu0 %v610
      %1159 = vmatprep.subr.mxu0 0.0
      %1160 = vmatpush1.msra.mxu0 %v621
      %1161 = vmatprep.subr.mxu0 0.0
      %1162 = vmatpush1.msra.mxu0 %v633
      %1163 = vmatprep.subr.mxu0 0.0
      %1164 = vmatpush1.msra.mxu0 0.0
      %1165 = vmatprep.subr.mxu0 0.0
      %1166 = vmatpush1.msra.mxu0 0.0
      %1167 = vmatprep.subr.mxu0 0.0
      %1168 = vmatpush1.msra.mxu0 0.0
      %1169 = vmatprep.subr.mxu0 0.0
      %1170 = vmatpush1.msra.mxu0 0.0
      %1171 = vmatprep.subr.mxu0 0.0
      %1172 = vmatpush1.msra.mxu0 0.0
      %1173 = vmatprep.subr.mxu0 0.0
      %1174 = vmatpush1.msra.mxu0 0.0
      %1175 = vmatprep.subr.mxu0 0.0
      %1176 = vmatpush1.msra.mxu0 0.0
      %1177 = vmatprep.subr.mxu0 0.0
      %1178 = vmatpush1.msra.mxu0 0.0
      %1179 = vmatprep.subr.mxu0 0.0
      %1180 = vmatpush1.msra.mxu0 0.0
      %1181 = vmatprep.subr.mxu0 0.0
      %1182 = vmatpush1.msra.mxu0 0.0
      %1183 = vmatprep.subr.mxu0 0.0
      %1184 = vmatpush1.msra.mxu0 0.0
      %1185 = vmatprep.subr.mxu0 0.0
      %1186 = vmatpush1.msra.mxu0 0.0
      %1187 = vmatprep.subr.mxu0 0.0
      %1188 = vmatpush1.msra.mxu0 0.0
      %1189 = vmatprep.subr.mxu0 0.0
      %1190 = vmatpush1.msra.mxu0 0.0
      %1191 = vmatprep.subr.mxu0 0.0
      %1192 = vmatpush1.msra.mxu0 0.0
      %1193 = vmatprep.subr.mxu0 0.0
      %1194 = vmatpush1.msra.mxu0 0.0
      %1195 = vmatprep.subr.mxu0 0.0
      %1196 = vmatpush1.msra.mxu0 0.0
      %1197 = vmatprep.subr.mxu0 0.0
      %1198 = vmatpush1.msra.mxu0 0.0
      %1199 = vmatprep.subr.mxu0 0.0
      %1200 = vmatpush1.msra.mxu0 0.0
      %1201 = vmatprep.subr.mxu0 0.0
      %1202 = vmatpush1.msra.mxu0 0.0
      %1203 = vmatprep.subr.mxu0 0.0
      %1204 = vmatpush1.msra.mxu0 0.0
      %1205 = vmatprep.subr.mxu0 0.0
      %1206 = vmatpush1.msra.mxu0 0.0
      %1207 = vmatprep.subr.mxu0 0.0
      %1208 = vmatpush1.msra.mxu0 0.0
      %1209 = vmatprep.subr.mxu0 0.0
      %1210 = vmatpush1.msra.mxu0 0.0
      %1211 = vmatprep.subr.mxu0 0.0
      %1212 = vmatpush1.msra.mxu0 0.0
      %1213 = vmatprep.subr.mxu0 0.0
      %1214 = vmatpush1.msra.mxu0 0.0
      %1215 = vmatprep.subr.mxu0 0.0
      %1216 = vmatpush1.msra.mxu0 0.0
      %1217 = vmatprep.mubr.f32.mxu0 0.0
      %1218 = vmatmul.mubr.f32.gmra.mrb[0].mxu0 %v1080
      %v1219 = vpop.f32.mrb[0].mxu0
      %v1220 = vadd.f32 %v1076, %v1219
      %v1221 = vpop.f32.mrb[0].mxu0
      %1222 = vdwg.mxu0
      %v1223 = vld [vmem:[%s7] sm:$0xff]
      %1225 = vset.pattern.permute.xlu0 0
      %1226 = vperm.xlu0 %1225, %v1223
      %v1227 = vpop.permute.xlu0 %1226
      %v1229 = vadd.f32 %v1149, %v1227
      %v1230 = vadd.f32 %v1151, %v1227
      %v1231 = vadd.f32 %v1220, %v1227
      %vm1232 = vcmp.ge.f32.partialorder %v1229, 0.0
      %vm1233 = vcmp.ge.f32.partialorder %v1230, 0.0
      %vm1234 = vcmp.ge.f32.partialorder %v1231, 0.0
      %v1235 = vmul.f32 %v1229, 0.1
      %v1236 = vmul.f32 %v1230, 0.1
      %v1237 = vmul.f32 %v1231, 0.1
      %v1238 = vsel %vm1232, %v1229, %v1235
      %v1239 = vsel %vm1233, %v1230, %v1236
      %v1240 = vsel %vm1234, %v1231, %v1237
      %1241 = vst [vmem:[%s305] sm:$0xff] %v1238
      %1242 = vst [vmem:[%s305 + $0x8] sm:$0xff] %v1239
      %vm1243 = vcmask 523264
      %1244 = vst.msk [vmem:[%s305 + $0x10] sm:$0xff] %vm1243, %v1240
      %p1245 = scmp.lt.s32.totalorder %s19, 1
      %s1246 = scalar_select %p1245, %s19, 1
      %s1247 = smul.addr %s1246, 3
      %s1248 = smul.addr %s1247, 8
      %s1249 = scalar_lea.vmem %s8, %s1248
      // Predicated region
      $region53: #{gcn_forward.1} parent=51 // pred_check
        %p1250 = pneg %p210
      $region54: #{gcn_forward.1} parent=51 // pred_check_branch
        %1252 = sbr.rel (%p1250) target = $region56
      $region55: #{gcn_forward.1} parent=51 // pred_region
        _
      $region56: #{gcn_forward.1} parent=51 // pred_fallthru
        _
    $region52: #{gcn_forward.1} parent=5 // pred_fallthru
      _
    %p1253 = scmp.le.s32.totalorder 2, %s14
    // Predicated region
    $region57: #{gcn_forward.1} parent=5 // pred_check
      %p1254 = pneg %p1253
    $region58: #{gcn_forward.1} parent=5 // pred_check_branch
      %1256 = sbr.rel (%p1254) target = $region60
    $region59: #{gcn_forward.1} parent=5 // pred_region
      %s1257 = ssub.s32 %s14, 2
      // Predicated region
      $region61: #{gcn_forward.1} parent=59 // pred_check
        %p1258 = pneg %p216
      $region62: #{gcn_forward.1} parent=59 // pred_check_branch
        %1260 = sbr.rel (%p1258) target = $region64
      $region63: #{gcn_forward.1} parent=59 // pred_region
        %p1261 = scmp.lt.s32.totalorder %s20, 1
        %s1262 = scalar_select %p1261, %s20, 1
        %s1263 = smul.addr %s1262, 3
        %s1264 = smul.addr %s1263, 8
        %s1265 = scalar_lea.vmem %s8, %s1264
      $region64: #{gcn_forward.1} parent=59 // pred_fallthru
        _
    $region60: #{gcn_forward.1} parent=5 // pred_fallthru
      _
  $region6: #{gcn_forward.1} parent=0 // loop_footer
    %s18 = sadd.s32 1, %s14
  $region7: #{gcn_forward.1} parent=0 // loop_footer_branch
    %13 = sbr.rel target = $region3
  $region8: #{gcn_forward.1} parent=0 // loop_exit
    _

</llo_original>
